<compile_context>
chip_gen: v6e
topology: v6e:2x2x1
jax: 0.10.0
libtpu: 0.0.40
codegen_flags: <defaults>
</compile_context>

<pallas_src>
import functools
import math

import jax
import jax.numpy as jnp
from jax import lax
from jax.experimental import pallas as pl
from jax.experimental.pallas import tpu as pltpu


def _round_up(x, m):
    return ((x + m - 1) // m) * m


def _vmem_capacity_bytes():
    """Physical VMEM of the attached TPU (conservative default if unknown)."""
    try:
        return int(pltpu.get_tpu_info().vmem_capacity_bytes)
    except Exception:
        return 64 * 2**20   # v7x-sized ceiling: safe on every generation


def _pick_query_tile(S, cap):
    """Largest 8-aligned divisor of S that is <= cap (whole S if it fits)."""
    if S <= cap:
        return S
    best = 0
    for t in range(8, cap + 1, 8):
        if S % t == 0:
            best = t
    if best:
        return best
    # TODO(synk): for very large S with no 8-aligned divisor, pad the query
    # axis (grid over cdiv) instead of falling back to a whole-S tile.
    return S


def _hopfield_kernel(x_ref, w_ref, o_ref, q_s, k_s, v_s, *, tq, hp):
    """x_ref: (1, S, Din); w_ref: (Din, 3*Hp); o_ref: (1, TQ, Hp).

    Scratch q_s / k_s / v_s: (S, Hp) in the compute dtype; they persist across
    the query-tile grid axis and are (re)computed at qi == 0 of every batch.
    """
    qi = pl.program_id(1)

    # QKV projection, once per batch (first query tile).  Three direct dots
    # against lane-aligned column windows of the fused weight, each written
    # straight into scratch; the f32 temp is bounded to a single (S, Hp) slab.
    # beta / sqrt(H) is already folded into the Q columns of w_ref.
    # TODO(synk): for very large Din*H, tile the projection over Din (or move
    # it to its own pallas_call) instead of holding the whole weight resident.
    @pl.when(qi == 0)
    def _():
        x_full = x_ref[0]                                            # (S, Din)
        q_s[...] = jnp.dot(x_full, w_ref[:, 0:hp],
                           preferred_element_type=jnp.float32).astype(q_s.dtype)
        k_s[...] = jnp.dot(x_full, w_ref[:, hp:2 * hp],
                           preferred_element_type=jnp.float32).astype(k_s.dtype)
        v_s[...] = jnp.dot(x_full, w_ref[:, 2 * hp:3 * hp],
                           preferred_element_type=jnp.float32).astype(v_s.dtype)

    start = qi * tq
    if tq % 8 == 0:
        start = pl.multiple_of(start, 8)
    q = q_s[pl.ds(start, tq), :]                                     # (TQ, Hp)

    # logits = (beta/sqrt(H)) * Q @ K^T; contraction on the last axis of both
    # operands (no in-kernel transpose / XLU pass), f32 accumulation.
    logits = lax.dot_general(q, k_s[...], (((1,), (1,)), ((), ())),
                             preferred_element_type=jnp.float32)     # (TQ, S)

    # Softmax in f32; approx reciprocal runs on the (otherwise idle) EUP slot.
    m = jnp.max(logits, axis=-1, keepdims=True)
    p = jnp.exp(logits - m)
    denom = jnp.sum(p, axis=-1, keepdims=True)
    attn = (p * pl.reciprocal(denom, approx=True)).astype(v_s.dtype)  # (TQ, S)

    out = jnp.dot(attn, v_s[...], preferred_element_type=jnp.float32)  # (TQ, Hp)
    o_ref[0] = out.astype(o_ref.dtype)
    # TODO(synk): for S >~ 4-8k switch to a KV-tile grid axis with online
    # softmax (flash pattern) instead of whole-S K/V scratch + (TQ, S) logits.


def modern_hopfield_layer(x, wq, wk, wv, *, beta=1.0, compute_dtype=jnp.bfloat16):
    """x: (B, S, Din); wq/wk/wv: (H, Din) (PyTorch nn.Linear convention).

    compute_dtype: dtype of the MXU operands (x, Q/K/V scratch, softmax
    probabilities).  bf16 is the standard attention recipe (f32 accumulation
    preserves the numerics) and avoids the multi-pass f32 MXU mode; pass
    jnp.float32 for a reference-faithful path.
    """
    B, S, Din = x.shape
    H = wq.shape[0]
    out_dtype = x.dtype
    cdt = jnp.dtype(compute_dtype)

    # Lane-dense padding of the hidden dim: every weight section, the scratch
    # buffers and the output block span whole 128-lane tiles.
    Hp = _round_up(H, 128)

    # Generation-aware tiling / VMEM budget.
    vmem_cap = _vmem_capacity_bytes()
    tq_cap = 512 if vmem_cap <= 96 * 2**20 else 1024       # v7x vs v5e/v6e
    tq = _pick_query_tile(S, tq_cap)
    n_qt = S // tq

    # Host-side fusion: [Wq^T * beta/sqrt(H) | Wk^T | Wv^T], each section
    # zero-padded to Hp columns -> (Din, 3*Hp).  Scale folded in f32.
    scale = float(beta) / math.sqrt(H)

    def _section(w, s=1.0):
        wt = (w.T.astype(jnp.float32) * s).astype(cdt)       # (Din, H)
        if Hp != H:
            wt = jnp.pad(wt, ((0, 0), (0, Hp - H)))
        return wt

    wqkv = jnp.concatenate([_section(wq, scale), _section(wk), _section(wv)],
                           axis=1)
    x_c = x.astype(cdt)

    # VMEM budget derived from the actual tiles, clamped to 85% of the chip's
    # physical VMEM (headroom for compiler scratch).
    isz = cdt.itemsize
    osz = jnp.dtype(out_dtype).itemsize
    est = (2 * S * Din * isz          # x block (double buffered)
           + Din * 3 * Hp * isz       # fused weights (single buffered)
           + 2 * tq * Hp * osz        # output block (double buffered)
           + 3 * S * Hp * isz         # Q/K/V scratch
           + 4 * S * Hp               # one (S, Hp) f32 projection temp
           + 3 * 4 * tq * S)          # logits / p / attn f32 temps
    vmem_limit = int(min(max(32 * 2**20, int(1.25 * est)),
                         int(0.85 * vmem_cap)))

    cost = pl.CostEstimate(
        flops=B * (2 * S * Din * 3 * Hp + 4 * S * S * Hp),
        transcendentals=B * S * S,
        bytes_accessed=(x_c.size * isz + wqkv.size * isz + B * S * Hp * osz),
    )

    kernel = functools.partial(_hopfield_kernel, tq=tq, hp=Hp)

    def _build(weight_buffer_count):
        w_kwargs = {}
        if weight_buffer_count is not None:
            w_kwargs["pipeline_mode"] = pl.Buffered(weight_buffer_count)
        return pl.pallas_call(
            kernel,
            out_shape=jax.ShapeDtypeStruct((B, S, Hp), out_dtype),
            grid_spec=pltpu.PrefetchScalarGridSpec(
                num_scalar_prefetch=0,
                grid=(B, n_qt),
                in_specs=[
                    pl.BlockSpec((1, S, Din), lambda b, qi: (b, 0, 0)),   # x
                    pl.BlockSpec((Din, 3 * Hp), lambda b, qi: (0, 0),     # W_qkv
                                 **w_kwargs),
                ],
                out_specs=pl.BlockSpec((1, tq, Hp), lambda b, qi: (b, qi, 0)),
                scratch_shapes=[
                    pltpu.VMEM((S, Hp), cdt),   # Q
                    pltpu.VMEM((S, Hp), cdt),   # K
                    pltpu.VMEM((S, Hp), cdt),   # V
                ],
            ),
            compiler_params=pltpu.CompilerParams(
                # TODO(synk): when B < 2 on v7x, split query tiles across both
                # TensorCores (each core re-running its own QKV projection).
                dimension_semantics=("parallel", "arbitrary"),
                vmem_limit_bytes=vmem_limit,
            ),
            cost_estimate=cost,
        )

    try:
        # The fused weight block never changes across the grid: single-buffer
        # it to halve its VMEM footprint.
        out = _build(1)(x_c, wqkv)
    except Exception:
        # Fallback: default double-buffered pipelining if buffer_count=1 is
        # not accepted by the installed JAX/Mosaic version.
        out = _build(None)(x_c, wqkv)

    if Hp != H:
        out = out[..., :H]
    return out


def reference_hopfield(x, wq, wk, wv, *, beta=1.0):
    """Pure-JAX reference matching the PyTorch forward exactly."""
    H = wq.shape[0]
    q = jnp.einsum("bsd,hd->bsh", x, wq)
    k = jnp.einsum("bsd,hd->bsh", x, wk)
    v = jnp.einsum("bsd,hd->bsh", x, wv)
    energy = jnp.einsum("bqh,bkh->bqk", q, k) / math.sqrt(H)
    attn = jax.nn.softmax(energy * beta, axis=-1)
    return jnp.einsum("bqk,bkh->bqh", attn, v)


if __name__ == "__main__":
    # Small shapes consistent with the module's forward: (batch, seq, input_size).
    B, S, Din, H = 2, 8, 16, 32
    beta = 1.0

    key = jax.random.PRNGKey(0)
    kx, kq, kk, kv = jax.random.split(key, 4)

    x = jax.random.normal(kx, (B, S, Din), dtype=jnp.float32)

    # Deterministic init mimicking nn.Linear(bias=False): U(-1/sqrt(in), 1/sqrt(in)),
    # weight shape (hidden_size, input_size).
    bound = 1.0 / math.sqrt(Din)
    wq = jax.random.uniform(kq, (H, Din), jnp.float32, -bound, bound)
    wk = jax.random.uniform(kk, (H, Din), jnp.float32, -bound, bound)
    wv = jax.random.uniform(kv, (H, Din), jnp.float32, -bound, bound)

    ref = reference_hopfield(x, wq, wk, wv, beta=beta)

    # Full-precision path: tight tolerance (approx EUP reciprocal in the
    # softmax denominator contributes ~1e-4 relative error).
    out_f32 = jax.block_until_ready(
        modern_hopfield_layer(x, wq, wk, wv, beta=beta,
                              compute_dtype=jnp.float32))
    assert out_f32.shape == (B, S, H), out_f32.shape
    assert jnp.allclose(out_f32, ref, atol=2e-3, rtol=2e-3), (
        float(jnp.max(jnp.abs(out_f32 - ref))))

    # Default fast path (bf16 MXU operands, f32 accumulation): looser tolerance.
    out_bf16 = jax.block_until_ready(
        modern_hopfield_layer(x, wq, wk, wv, beta=beta))
    assert out_bf16.shape == (B, S, H), out_bf16.shape
    assert jnp.allclose(out_bf16, ref, atol=5e-2, rtol=5e-2), (
        float(jnp.max(jnp.abs(out_bf16 - ref))))

    print("KERNEL_OK")
</pallas_src>

<mosaic_0001>
module attributes {stable_mosaic.version = 11 : i64} {
  func.func @_hopfield_kernel(%arg0: i32, %arg1: i32, %arg2: memref<1x8x16xf32, #tpu.memory_space<vmem>>, %arg3: memref<16x384xf32, #tpu.memory_space<vmem>>, %arg4: memref<1x8x128xf32, #tpu.memory_space<vmem>>, %arg5: memref<8x128xf32, #tpu.memory_space<vmem>>, %arg6: memref<8x128xf32, #tpu.memory_space<vmem>>, %arg7: memref<8x128xf32, #tpu.memory_space<vmem>>) attributes {dimension_semantics = [#tpu.dimension_semantics<parallel>, #tpu.dimension_semantics<arbitrary>], iteration_bounds = array<i64: 2, 1>, scalar_prefetch = 0 : i64, scratch_operands = 3 : i64, tpu.core_type = #tpu.core_type<tc>, window_params = [{transform_indices = @transform_0, window_bounds = array<i64: 1, 8, 16>}, {pipeline_mode = #tpu.pipeline_mode<synchronous>, transform_indices = @transform_1, window_bounds = array<i64: 16, 384>}, {transform_indices = @transform_2, window_bounds = array<i64: 1, 8, 128>}]} {
    %c0_i32 = arith.constant 0 : i32
    %0 = arith.cmpi eq, %arg1, %c0_i32 : i32
    %1 = arith.extui %0 : i1 to i32
    %c0_i32_0 = arith.constant 0 : i32
    %2 = arith.cmpi ne, %1, %c0_i32_0 : i32
    scf.if %2 {
      %c0_11 = arith.constant 0 : index
      %c0_12 = arith.constant 0 : index
      %c0_13 = arith.constant 0 : index
      %24 = vector.load %arg2[%c0_11, %c0_12, %c0_13] : memref<1x8x16xf32, #tpu.memory_space<vmem>>, vector<1x8x16xf32>
      %25 = vector.shape_cast %24 : vector<1x8x16xf32> to vector<8x16xf32>
      %c0_14 = arith.constant 0 : index
      %c0_15 = arith.constant 0 : index
      %26 = vector.load %arg3[%c0_14, %c0_15] : memref<16x384xf32, #tpu.memory_space<vmem>>, vector<16x128xf32>
      %cst_16 = arith.constant dense<0.000000e+00> : vector<8x128xf32>
      %27 = tpu.matmul %25, %26, %cst_16 {dimension_numbers = #tpu.dot_dimension_numbers<[1], [0], [0], [1], [0, 0, 1, 1], [], []>} : vector<8x16xf32>, vector<16x128xf32>, vector<8x128xf32> -> vector<8x128xf32>
      %c0_17 = arith.constant 0 : index
      %c0_18 = arith.constant 0 : index
      %28 = vector.load %arg5[%c0_17, %c0_18] : memref<8x128xf32, #tpu.memory_space<vmem>>, vector<8x128xf32>
      tpu.vector_store %arg5[%c0_17, %c0_18], %27 {strides = array<i32>} : memref<8x128xf32, #tpu.memory_space<vmem>>, vector<8x128xf32>,
      %c0_19 = arith.constant 0 : index
      %c128 = arith.constant 128 : index
      %29 = vector.load %arg3[%c0_19, %c128] : memref<16x384xf32, #tpu.memory_space<vmem>>, vector<16x128xf32>
      %cst_20 = arith.constant dense<0.000000e+00> : vector<8x128xf32>
      %30 = tpu.matmul %25, %29, %cst_20 {dimension_numbers = #tpu.dot_dimension_numbers<[1], [0], [0], [1], [0, 0, 1, 1], [], []>} : vector<8x16xf32>, vector<16x128xf32>, vector<8x128xf32> -> vector<8x128xf32>
      %c0_21 = arith.constant 0 : index
      %c0_22 = arith.constant 0 : index
      %31 = vector.load %arg6[%c0_21, %c0_22] : memref<8x128xf32, #tpu.memory_space<vmem>>, vector<8x128xf32>
      tpu.vector_store %arg6[%c0_21, %c0_22], %30 {strides = array<i32>} : memref<8x128xf32, #tpu.memory_space<vmem>>, vector<8x128xf32>,
      %c0_23 = arith.constant 0 : index
      %c256 = arith.constant 256 : index
      %32 = vector.load %arg3[%c0_23, %c256] : memref<16x384xf32, #tpu.memory_space<vmem>>, vector<16x128xf32>
      %cst_24 = arith.constant dense<0.000000e+00> : vector<8x128xf32>
      %33 = tpu.matmul %25, %32, %cst_24 {dimension_numbers = #tpu.dot_dimension_numbers<[1], [0], [0], [1], [0, 0, 1, 1], [], []>} : vector<8x16xf32>, vector<16x128xf32>, vector<8x128xf32> -> vector<8x128xf32>
      %c0_25 = arith.constant 0 : index
      %c0_26 = arith.constant 0 : index
      %34 = vector.load %arg7[%c0_25, %c0_26] : memref<8x128xf32, #tpu.memory_space<vmem>>, vector<8x128xf32>
      tpu.vector_store %arg7[%c0_25, %c0_26], %33 {strides = array<i32>} : memref<8x128xf32, #tpu.memory_space<vmem>>, vector<8x128xf32>,
    } else {
    }
    %c8_i32 = arith.constant 8 : i32
    %3 = arith.muli %arg1, %c8_i32 : i32
    %4 = tpu.assume_multiple %3, 8 : i32
    %5 = arith.index_cast %4 : i32 to index
    %c0 = arith.constant 0 : index
    %6 = vector.load %arg5[%5, %c0] : memref<8x128xf32, #tpu.memory_space<vmem>>, vector<8x128xf32>
    %c0_1 = arith.constant 0 : index
    %c0_2 = arith.constant 0 : index
    %7 = vector.load %arg6[%c0_1, %c0_2] : memref<8x128xf32, #tpu.memory_space<vmem>>, vector<8x128xf32>
    %cst = arith.constant dense<0.000000e+00> : vector<8x8xf32>
    %8 = tpu.matmul %6, %7, %cst {dimension_numbers = #tpu.dot_dimension_numbers<[1], [1], [0], [0], [0, 0, 1, 0], [], []>} : vector<8x128xf32>, vector<8x128xf32>, vector<8x8xf32> -> vector<8x8xf32>
    %cst_3 = arith.constant dense<0xFF800000> : vector<8xf32>
    %9 = vector.multi_reduction <maximumf>, %8, %cst_3 [1] : vector<8x8xf32> to vector<8xf32>
    %10 = vector.shape_cast %9 : vector<8xf32> to vector<8x1xf32>
    %11 = vector.broadcast %10 : vector<8x1xf32> to vector<8x8xf32>
    %12 = arith.subf %8, %11 : vector<8x8xf32>
    %13 = math.exp %12 : vector<8x8xf32>
    %cst_4 = arith.constant dense<0.000000e+00> : vector<8xf32>
    %14 = vector.multi_reduction <add>, %13, %cst_4 [1] : vector<8x8xf32> to vector<8xf32>
    %15 = vector.shape_cast %14 : vector<8xf32> to vector<8x1xf32>
    %16 = tpu.reciprocal %15 {approx = true} : vector<8x1xf32> -> vector<8x1xf32>
    %17 = vector.broadcast %16 : vector<8x1xf32> to vector<8x8xf32>
    %18 = arith.mulf %13, %17 : vector<8x8xf32>
    %c0_5 = arith.constant 0 : index
    %c0_6 = arith.constant 0 : index
    %19 = vector.load %arg7[%c0_5, %c0_6] : memref<8x128xf32, #tpu.memory_space<vmem>>, vector<8x128xf32>
    %cst_7 = arith.constant dense<0.000000e+00> : vector<8x128xf32>
    %20 = tpu.matmul %18, %19, %cst_7 {dimension_numbers = #tpu.dot_dimension_numbers<[1], [0], [0], [1], [0, 0, 1, 1], [], []>} : vector<8x8xf32>, vector<8x128xf32>, vector<8x128xf32> -> vector<8x128xf32>
    %c0_8 = arith.constant 0 : index
    %c0_9 = arith.constant 0 : index
    %c0_10 = arith.constant 0 : index
    %21 = vector.load %arg4[%c0_8, %c0_9, %c0_10] : memref<1x8x128xf32, #tpu.memory_space<vmem>>, vector<1x8x128xf32>
    %22 = vector.shape_cast %21 : vector<1x8x128xf32> to vector<8x128xf32>
    %23 = vector.shape_cast %20 : vector<8x128xf32> to vector<1x8x128xf32>
    tpu.vector_store %arg4[%c0_8, %c0_9, %c0_10], %23 {strides = array<i32>} : memref<1x8x128xf32, #tpu.memory_space<vmem>>, vector<1x8x128xf32>,
    return
  }
  func.func @transform_0(%arg0: i32, %arg1: i32) -> (i32, i32, i32) {
    %c0_i32 = arith.constant 0 : i32
    %c0_i32_0 = arith.constant 0 : i32
    %c0_i32_1 = arith.constant 0 : i32
    return %arg0, %c0_i32, %c0_i32_0 : i32, i32, i32
  }
  func.func @transform_1(%arg0: i32, %arg1: i32) -> (i32, i32) {
    %c0_i32 = arith.constant 0 : i32
    %c0_i32_0 = arith.constant 0 : i32
    %c0_i32_1 = arith.constant 0 : i32
    return %c0_i32, %c0_i32_0 : i32, i32
  }
  func.func @transform_2(%arg0: i32, %arg1: i32) -> (i32, i32, i32) {
    %c0_i32 = arith.constant 0 : i32
    %c0_i32_0 = arith.constant 0 : i32
    return %arg0, %arg1, %c0_i32 : i32, i32, i32
  }
}

module attributes {stable_mosaic.version = 11 : i64} {
  func.func @_hopfield_kernel(%arg0: i32, %arg1: i32, %arg2: memref<1x8x16xf32, #tpu.memory_space<vmem>>, %arg3: memref<16x384xf32, #tpu.memory_space<vmem>>, %arg4: memref<1x8x128xf32, #tpu.memory_space<vmem>>, %arg5: memref<8x128xf32, #tpu.memory_space<vmem>>, %arg6: memref<8x128xf32, #tpu.memory_space<vmem>>, %arg7: memref<8x128xf32, #tpu.memory_space<vmem>>) attributes {dimension_semantics = [#tpu.dimension_semantics<parallel>, #tpu.dimension_semantics<arbitrary>], iteration_bounds = array<i64: 2, 1>, scalar_prefetch = 0 : i64, scratch_operands = 3 : i64, tpu.core_type = #tpu.core_type<tc>, window_params = [{transform_indices = @transform_0, window_bounds = array<i64: 1, 8, 16>}, {pipeline_mode = #tpu.pipeline_mode<synchronous>, transform_indices = @transform_1, window_bounds = array<i64: 16, 384>}, {transform_indices = @transform_2, window_bounds = array<i64: 1, 8, 128>}]} {
    %c0_i32 = arith.constant 0 : i32
    %0 = arith.cmpi eq, %arg1, %c0_i32 : i32
    %1 = arith.extui %0 : i1 to i32
    %c0_i32_0 = arith.constant 0 : i32
    %2 = arith.cmpi ne, %1, %c0_i32_0 : i32
    scf.if %2 {
      %c0_11 = arith.constant 0 : index
      %c0_12 = arith.constant 0 : index
      %c0_13 = arith.constant 0 : index
      %24 = vector.load %arg2[%c0_11, %c0_12, %c0_13] : memref<1x8x16xf32, #tpu.memory_space<vmem>>, vector<1x8x16xf32>
      %25 = vector.shape_cast %24 : vector<1x8x16xf32> to vector<8x16xf32>
      %c0_14 = arith.constant 0 : index
      %c0_15 = arith.constant 0 : index
      %26 = vector.load %arg3[%c0_14, %c0_15] : memref<16x384xf32, #tpu.memory_space<vmem>>, vector<16x128xf32>
      %cst_16 = arith.constant dense<0.000000e+00> : vector<8x128xf32>
      %27 = tpu.matmul %25, %26, %cst_16 {dimension_numbers = #tpu.dot_dimension_numbers<[1], [0], [0], [1], [0, 0, 1, 1], [], []>} : vector<8x16xf32>, vector<16x128xf32>, vector<8x128xf32> -> vector<8x128xf32>
      %c0_17 = arith.constant 0 : index
      %c0_18 = arith.constant 0 : index
      %28 = vector.load %arg5[%c0_17, %c0_18] : memref<8x128xf32, #tpu.memory_space<vmem>>, vector<8x128xf32>
      tpu.vector_store %arg5[%c0_17, %c0_18], %27 {strides = array<i32>} : memref<8x128xf32, #tpu.memory_space<vmem>>, vector<8x128xf32>,
      %c0_19 = arith.constant 0 : index
      %c128 = arith.constant 128 : index
      %29 = vector.load %arg3[%c0_19, %c128] : memref<16x384xf32, #tpu.memory_space<vmem>>, vector<16x128xf32>
      %cst_20 = arith.constant dense<0.000000e+00> : vector<8x128xf32>
      %30 = tpu.matmul %25, %29, %cst_20 {dimension_numbers = #tpu.dot_dimension_numbers<[1], [0], [0], [1], [0, 0, 1, 1], [], []>} : vector<8x16xf32>, vector<16x128xf32>, vector<8x128xf32> -> vector<8x128xf32>
      %c0_21 = arith.constant 0 : index
      %c0_22 = arith.constant 0 : index
      %31 = vector.load %arg6[%c0_21, %c0_22] : memref<8x128xf32, #tpu.memory_space<vmem>>, vector<8x128xf32>
      tpu.vector_store %arg6[%c0_21, %c0_22], %30 {strides = array<i32>} : memref<8x128xf32, #tpu.memory_space<vmem>>, vector<8x128xf32>,
      %c0_23 = arith.constant 0 : index
      %c256 = arith.constant 256 : index
      %32 = vector.load %arg3[%c0_23, %c256] : memref<16x384xf32, #tpu.memory_space<vmem>>, vector<16x128xf32>
      %cst_24 = arith.constant dense<0.000000e+00> : vector<8x128xf32>
      %33 = tpu.matmul %25, %32, %cst_24 {dimension_numbers = #tpu.dot_dimension_numbers<[1], [0], [0], [1], [0, 0, 1, 1], [], []>} : vector<8x16xf32>, vector<16x128xf32>, vector<8x128xf32> -> vector<8x128xf32>
      %c0_25 = arith.constant 0 : index
      %c0_26 = arith.constant 0 : index
      %34 = vector.load %arg7[%c0_25, %c0_26] : memref<8x128xf32, #tpu.memory_space<vmem>>, vector<8x128xf32>
      tpu.vector_store %arg7[%c0_25, %c0_26], %33 {strides = array<i32>} : memref<8x128xf32, #tpu.memory_space<vmem>>, vector<8x128xf32>,
    } else {
    }
    %c8_i32 = arith.constant 8 : i32
    %3 = arith.muli %arg1, %c8_i32 : i32
    %4 = tpu.assume_multiple %3, 8 : i32
    %5 = arith.index_cast %4 : i32 to index
    %c0 = arith.constant 0 : index
    %6 = vector.load %arg5[%5, %c0] : memref<8x128xf32, #tpu.memory_space<vmem>>, vector<8x128xf32>
    %c0_1 = arith.constant 0 : index
    %c0_2 = arith.constant 0 : index
    %7 = vector.load %arg6[%c0_1, %c0_2] : memref<8x128xf32, #tpu.memory_space<vmem>>, vector<8x128xf32>
    %cst = arith.constant dense<0.000000e+00> : vector<8x8xf32>
    %8 = tpu.matmul %6, %7, %cst {dimension_numbers = #tpu.dot_dimension_numbers<[1], [1], [0], [0], [0, 0, 1, 0], [], []>} : vector<8x128xf32>, vector<8x128xf32>, vector<8x8xf32> -> vector<8x8xf32>
    %cst_3 = arith.constant dense<0xFF800000> : vector<8xf32>
    %9 = vector.multi_reduction <maximumf>, %8, %cst_3 [1] : vector<8x8xf32> to vector<8xf32>
    %10 = vector.shape_cast %9 : vector<8xf32> to vector<8x1xf32>
    %11 = vector.broadcast %10 : vector<8x1xf32> to vector<8x8xf32>
    %12 = arith.subf %8, %11 : vector<8x8xf32>
    %13 = math.exp %12 : vector<8x8xf32>
    %cst_4 = arith.constant dense<0.000000e+00> : vector<8xf32>
    %14 = vector.multi_reduction <add>, %13, %cst_4 [1] : vector<8x8xf32> to vector<8xf32>
    %15 = vector.shape_cast %14 : vector<8xf32> to vector<8x1xf32>
    %16 = tpu.reciprocal %15 {approx = true} : vector<8x1xf32> -> vector<8x1xf32>
    %17 = vector.broadcast %16 : vector<8x1xf32> to vector<8x8xf32>
    %18 = arith.mulf %13, %17 : vector<8x8xf32>
    %c0_5 = arith.constant 0 : index
    %c0_6 = arith.constant 0 : index
    %19 = vector.load %arg7[%c0_5, %c0_6] : memref<8x128xf32, #tpu.memory_space<vmem>>, vector<8x128xf32>
    %cst_7 = arith.constant dense<0.000000e+00> : vector<8x128xf32>
    %20 = tpu.matmul %18, %19, %cst_7 {dimension_numbers = #tpu.dot_dimension_numbers<[1], [0], [0], [1], [0, 0, 1, 1], [], []>} : vector<8x8xf32>, vector<8x128xf32>, vector<8x128xf32> -> vector<8x128xf32>
    %c0_8 = arith.constant 0 : index
    %c0_9 = arith.constant 0 : index
    %c0_10 = arith.constant 0 : index
    %21 = vector.load %arg4[%c0_8, %c0_9, %c0_10] : memref<1x8x128xf32, #tpu.memory_space<vmem>>, vector<1x8x128xf32>
    %22 = vector.shape_cast %21 : vector<1x8x128xf32> to vector<8x128xf32>
    %23 = vector.shape_cast %20 : vector<8x128xf32> to vector<1x8x128xf32>
    tpu.vector_store %arg4[%c0_8, %c0_9, %c0_10], %23 {strides = array<i32>} : memref<1x8x128xf32, #tpu.memory_space<vmem>>, vector<1x8x128xf32>,
    return
  }
  func.func @transform_0(%arg0: i32, %arg1: i32) -> (i32, i32, i32) {
    %c0_i32 = arith.constant 0 : i32
    %c0_i32_0 = arith.constant 0 : i32
    %c0_i32_1 = arith.constant 0 : i32
    return %arg0, %c0_i32, %c0_i32_0 : i32, i32, i32
  }
  func.func @transform_1(%arg0: i32, %arg1: i32) -> (i32, i32) {
    %c0_i32 = arith.constant 0 : i32
    %c0_i32_0 = arith.constant 0 : i32
    %c0_i32_1 = arith.constant 0 : i32
    return %c0_i32, %c0_i32_0 : i32, i32
  }
  func.func @transform_2(%arg0: i32, %arg1: i32) -> (i32, i32, i32) {
    %c0_i32 = arith.constant 0 : i32
    %c0_i32_0 = arith.constant 0 : i32
    return %arg0, %arg1, %c0_i32 : i32, i32, i32
  }
}

</mosaic_0001>

<llo_original>
// kernel: tpu_custom_call.1
$region0: #{tpu_custom_call.1}
  #allocation0 [shape = 'u32[]', space=smem, size = 0x4, offset = 0x4, fixed_abs, tag = 'smem constant byte address 0x4 - core index']
  #allocation1 [shape = 'u32[144,128]{1,0:T(1,128)}', space=vmem, size = 0x12000, scoped, tag = 'internal scratch']
  #allocation2 [shape = 'f32[8,128]{1,0:T(8,128)}', space=vmem, size = 0x1000, scoped, tag = 'scratch operand']
  #allocation3 [shape = 'f32[8,128]{1,0:T(8,128)}', space=vmem, size = 0x1000, scoped, tag = 'scratch operand']
  #allocation4 [shape = 'f32[8,128]{1,0:T(8,128)}', space=vmem, size = 0x1000, scoped, tag = 'scratch operand']
  %s0 = inlined_call_operand.hbm [shape: f32[2,8,16], index: 0, kind: input, shape index: {}]
  %s1 = inlined_call_operand.hbm [shape: f32[16,384], index: 1, kind: input, shape index: {}]
  %s2 = inlined_call_operand.hbm [shape: f32[2,8,128], index: 2, kind: output, shape index: {}]
  %s3 = sld [smem:[#allocation0]]
  $region53: #{tpu_custom_call.1} parent=0
    _
  %s5 = ssub.s32 1, %s3
  %s6 = scalar_select 0, %s5, %s3
  $region1: #{tpu_custom_call.1} parent=0
    #allocation5 [shape = 'u8[8192]{0}', space=vmem, size = 0x2000, scoped, tag = 'input window, operand 0']
    #allocation6 [shape = 's32[2]{0}', space=sflag, size = 0x8, scoped, tag = 'scoped memory for tpu_custom_call.1']
    #allocation7 [shape = 's32[2]{0}', space=sflag, size = 0x8, scoped, tag = 'scoped memory for tpu_custom_call.1']
    #allocation8 [shape = 'u8[24576]{0}', space=vmem, size = 0x6000, scoped, tag = 'input window, operand 1, single buffered']
    #allocation9 [shape = 's32[1]{0}', space=sflag, size = 0x4, scoped, tag = 'scoped memory for tpu_custom_call.1']
    #allocation10 [shape = 'u8[8192]{0}', space=vmem, size = 0x2000, scoped, tag = 'output window, operand 0']
    %7 = vsyncpa [#allocation6], 0
    %s8 = scalar_lea.sflag [#allocation6], 1
    %9 = vsyncpa %s8, 0
    %10 = vsyncpa [#allocation9], 0
    %11 = vsyncpa [#allocation7], 0
    %s12 = scalar_lea.sflag [#allocation7], 1
    %13 = vsyncpa %s12, 0
    loop: start=0, step=1, limit=4
    $region2: #{tpu_custom_call.1} parent=1 // loop_pre_header
      _
    $region3: #{tpu_custom_call.1} parent=1 // loop_header
      %s15 = sphi 0, %s19
      %p16 = scmp.ge.s32.totalorder %s15, 4
      %s22 = sphi 0, %s34
      %s23 = sphi 0, %s30
      %s24 = sphi 0, %s22
      %s25 = sphi 0, %s23
      %s26 = sphi 0, %s24
      %s27 = sphi 0, %s25
      %s37 = sphi 0, %s39
      %s40 = sphi 0, %s37
      %s41 = sphi 0, %s40
      %s57 = sphi 0, %s41
      %s61 = sphi 0, %s61
      %s63 = sphi 0, %s61
      %s64 = sphi 0, %s63
      %s78 = sphi 0, %s64
      %s86 = sphi 0, %s88
      %s89 = sphi 0, %s86
      %s90 = sphi 0, %s89
      %s106 = sphi 0, %s90
    $region4: #{tpu_custom_call.1} parent=1 // loop_header_branch
      %18 = sbr.rel (%p16) target = $region8
    $region5: #{tpu_custom_call.1} parent=1 // loop_body
      %s20 = ssub.s32 %s15, 1
      %s21 = ssub.s32 %s15, 2
      %s28 = sadd.s32 1, %s23
      %p29 = scmp.ge.s32.totalorder %s28, 1
      %s30 = scalar_select %p29, 0, %s28
      %s31 = sadd.s32 1, %s22
      %s32 = scalar_select %p29, %s31, %s22
      %p33 = scmp.ge.s32.totalorder %s32, 2
      %s34 = scalar_select %p33, 0, %s32
      %s35 = ssub.s32 %s22, %s34
      %p36 = scmp.eq.s32.totalorder %s35, 0
      %s38 = sadd.s32 %s37, 1
      %s39 = scalar_select %p36, %s37, %s38
      %p42 = pneg %p36
      %p43 = scmp.eq.s32.totalorder %s15, 1
      %p44 = por %p42, %p43
      %p45 = scmp.ne.s32.totalorder %s37, %s40
      %p46 = scmp.eq.s32.totalorder %s15, 0
      %p47 = por %p45, %p46
      %p48 = scmp.ne.s32.totalorder %s37, %s40
      %p49 = scmp.eq.s32.totalorder %s20, 1
      %p50 = por %p48, %p49
      %p51 = scmp.ne.s32.totalorder %s40, %s41
      %p52 = scmp.eq.s32.totalorder %s20, 0
      %p53 = por %p51, %p52
      %p54 = scmp.ne.s32.totalorder %s40, %s41
      %p55 = scmp.eq.s32.totalorder %s21, 1
      %p56 = por %p54, %p55
      %p58 = scmp.ne.s32.totalorder %s41, %s57
      %p59 = scmp.eq.s32.totalorder %s21, 0
      %p60 = por %p58, %p59
      %s62 = sadd.s32 %s61, 1
      %p65 = scmp.eq.s32.totalorder %s15, 1
      %p66 = scmp.ne.s32.totalorder %s61, %s63
      %p67 = scmp.eq.s32.totalorder %s15, 0
      %p68 = por %p66, %p67
      %p69 = scmp.ne.s32.totalorder %s61, %s63
      %p70 = scmp.eq.s32.totalorder %s20, 1
      %p71 = por %p69, %p70
      %p72 = scmp.ne.s32.totalorder %s63, %s64
      %p73 = scmp.eq.s32.totalorder %s20, 0
      %p74 = por %p72, %p73
      %p75 = scmp.ne.s32.totalorder %s63, %s64
      %p76 = scmp.eq.s32.totalorder %s21, 1
      %p77 = por %p75, %p76
      %p79 = scmp.ne.s32.totalorder %s64, %s78
      %p80 = scmp.eq.s32.totalorder %s21, 0
      %p81 = por %p79, %p80
      %s82 = ssub.s32 %s22, %s34
      %s83 = ssub.s32 %s23, %s30
      %s84 = sor.u32 %s82, %s83
      %p85 = scmp.eq.s32.totalorder %s84, 0
      %s87 = sadd.s32 %s86, 1
      %s88 = scalar_select %p85, %s86, %s87
      %p91 = pneg %p85
      %p92 = scmp.eq.s32.totalorder %s15, 1
      %p93 = por %p91, %p92
      %p94 = scmp.ne.s32.totalorder %s86, %s89
      %p95 = scmp.eq.s32.totalorder %s15, 0
      %p96 = por %p94, %p95
      %p97 = scmp.ne.s32.totalorder %s86, %s89
      %p98 = scmp.eq.s32.totalorder %s20, 1
      %p99 = por %p97, %p98
      %p100 = scmp.ne.s32.totalorder %s89, %s90
      %p101 = scmp.eq.s32.totalorder %s20, 0
      %p102 = por %p100, %p101
      %p103 = scmp.ne.s32.totalorder %s89, %s90
      %p104 = scmp.eq.s32.totalorder %s21, 1
      %p105 = por %p103, %p104
      %p107 = scmp.ne.s32.totalorder %s90, %s106
      %p108 = scmp.eq.s32.totalorder %s21, 0
      %p109 = por %p107, %p108
      %p110 = scmp.le.s32.totalorder 1, %s15
      %p111 = scmp.lt.s32.totalorder %s15, 3
      %p112 = pnand %p110, %p111
      %p113 = pneg %p112
      // Predicated region
      $region9: #{tpu_custom_call.1} parent=5 // pred_check
        _
      $region10: #{tpu_custom_call.1} parent=5 // pred_check_branch
        %115 = sbr.rel (%p112) target = $region12
      $region11: #{tpu_custom_call.1} parent=5 // pred_region
        %s116 = ssub.s32 %s15, 1
        // Predicated region
        $region13: #{tpu_custom_call.1} parent=11 // pred_check
          %p117 = pneg %p74
        $region14: #{tpu_custom_call.1} parent=11 // pred_check_branch
          %119 = sbr.rel (%p117) target = $region16
        $region15: #{tpu_custom_call.1} parent=11 // pred_region
          %s121 = ssub.s32 768, 768
          %122 = vsyncadd [#allocation9], %s121
          %s123 = sshll.u32 [#allocation8], 4
          %s124 = int_to_ptr.vmem [resolvable:$true] %s123
          %129 = dma.hbm_to_vmem [thread:$0]  %s1, 768, %s124, [#allocation9], 384, 384, 24
        $region16: #{tpu_custom_call.1} parent=11 // pred_fallthru
          _
      $region12: #{tpu_custom_call.1} parent=5 // pred_fallthru
        _
      %p130 = scmp.lt.s32.totalorder %s15, 2
      // Predicated region
      $region17: #{tpu_custom_call.1} parent=5 // pred_check
        %p131 = pneg %p130
      $region18: #{tpu_custom_call.1} parent=5 // pred_check_branch
        %133 = sbr.rel (%p131) target = $region20
      $region19: #{tpu_custom_call.1} parent=5 // pred_region
        // Predicated region
        $region21: #{tpu_custom_call.1} parent=19 // pred_check
          %p134 = pneg %p47
        $region22: #{tpu_custom_call.1} parent=19 // pred_check_branch
          %136 = sbr.rel (%p134) target = $region24
        $region23: #{tpu_custom_call.1} parent=19 // pred_region
          %s137 = sand.u32 %s37, 1
          %s138 = scalar_lea.sflag [#allocation6], %s137
          %s139 = sand.u32 %s37, 1
          %s140 = smul.addr %s139, 8
          %s141 = scalar_lea.vmem [#allocation5], %s140
          %s143 = ssub.s32 128, 128
          %144 = vsyncadd %s138, %s143
          %s145 = smul.addr %s22, 128
          %s146 = scalar_lea.hbm %s0, %s145
          %s148 = sshll.u32 %s141, 4
          %s149 = int_to_ptr.vmem [resolvable:$true] %s148
          %151 = dma.hbm_to_vmem [thread:$0]  %s146, 128, %s149, %s138
        $region24: #{tpu_custom_call.1} parent=19 // pred_fallthru
          _
      $region20: #{tpu_custom_call.1} parent=5 // pred_fallthru
        _
      %p152 = scmp.le.s32.totalorder 1, %s15
      %p153 = scmp.lt.s32.totalorder %s15, 3
      %p154 = pnand %p152, %p153
      %p155 = pneg %p154
      // Predicated region
      $region25: #{tpu_custom_call.1} parent=5 // pred_check
        _
      $region26: #{tpu_custom_call.1} parent=5 // pred_check_branch
        %157 = sbr.rel (%p154) target = $region28
      $region27: #{tpu_custom_call.1} parent=5 // pred_region
        %s158 = ssub.s32 %s15, 1
        %s159 = sand.u32 %s40, 1
        %s160 = scalar_lea.sflag [#allocation6], %s159
        %s161 = sand.u32 %s40, 1
        %s162 = smul.addr %s161, 8
        %s163 = scalar_lea.vmem [#allocation5], %s162
        // Predicated region
        $region29: #{tpu_custom_call.1} parent=27 // pred_check
          %p164 = pneg %p53
        $region30: #{tpu_custom_call.1} parent=27 // pred_check_branch
          %166 = sbr.rel (%p164) target = $region32
        $region31: #{tpu_custom_call.1} parent=27 // pred_region
          %167 = dma.done %s160, 128
        $region32: #{tpu_custom_call.1} parent=27 // pred_fallthru
          _
        // Predicated region
        $region33: #{tpu_custom_call.1} parent=27 // pred_check
          %p168 = pneg %p74
        $region34: #{tpu_custom_call.1} parent=27 // pred_check_branch
          %170 = sbr.rel (%p168) target = $region36
        $region35: #{tpu_custom_call.1} parent=27 // pred_region
          %171 = dma.done [#allocation9], 768
        $region36: #{tpu_custom_call.1} parent=27 // pred_fallthru
          _
        %s172 = sand.u32 %s40, 1
        %s173 = scalar_lea.sflag [#allocation6], %s172
        %s174 = sand.u32 %s40, 1
        %s175 = smul.addr %s174, 8
        %s176 = scalar_lea.vmem [#allocation5], %s175
        %p177 = pneg %p53
        %p178 = pneg %p50
        %p179 = pneg %p74
        %p180 = pneg %p71
        %p181 = pneg %p102
        %p182 = pneg %p99
        %s183 = sand.u32 %s89, 1
        %s184 = scalar_lea.sflag [#allocation7], %s183
        %s185 = sand.u32 %s89, 1
        %s186 = smul.addr %s185, 8
        %s187 = scalar_lea.vmem [#allocation10], %s186
        %p188 = scmp.eq.s32.totalorder %s25, 0
        // Predicated region
        $region37: #{tpu_custom_call.1} parent=27 // pred_check
          %p189 = pneg %p188
        $region38: #{tpu_custom_call.1} parent=27 // pred_check_branch
          %191 = sbr.rel (%p189) target = $region40
        $region39: #{tpu_custom_call.1} parent=27 // pred_region
          %v192 = vld [vmem:[%s163] sm:$0xff]
          %v193 = vld [vmem:[#allocation8] sm:$0xff]
          %v194 = vld [vmem:[#allocation8 + $0x18] sm:$0xff]
          %vm195 = vcmask 130048
          %v197 = vsel %vm195, %v192, 0
          %199 = vmatprep.subr.mxu0 0.0
          %200 = vmatpush1.msra.mxu0 0.0
          %201 = vmatprep.subr.mxu0 0.0
          %202 = vmatpush1.msra.mxu0 0.0
          %203 = vmatprep.subr.mxu0 0.0
          %204 = vmatpush1.msra.mxu0 0.0
          %205 = vmatprep.subr.mxu0 0.0
          %206 = vmatpush1.msra.mxu0 0.0
          %207 = vmatprep.subr.mxu0 0.0
          %208 = vmatpush1.msra.mxu0 0.0
          %209 = vmatprep.subr.mxu0 0.0
          %210 = vmatpush1.msra.mxu0 0.0
          %211 = vmatprep.subr.mxu0 0.0
          %212 = vmatpush1.msra.mxu0 0.0
          %213 = vmatprep.subr.mxu0 0.0
          %214 = vmatpush1.msra.mxu0 0.0
          %215 = vmatprep.subr.mxu0 0.0
          %216 = vmatpush1.msra.mxu0 0.0
          %217 = vmatprep.subr.mxu0 0.0
          %218 = vmatpush1.msra.mxu0 0.0
          %219 = vmatprep.subr.mxu0 0.0
          %220 = vmatpush1.msra.mxu0 0.0
          %221 = vmatprep.subr.mxu0 0.0
          %222 = vmatpush1.msra.mxu0 0.0
          %223 = vmatprep.subr.mxu0 0.0
          %224 = vmatpush1.msra.mxu0 0.0
          %225 = vmatprep.subr.mxu0 0.0
          %226 = vmatpush1.msra.mxu0 0.0
          %227 = vmatprep.subr.mxu0 0.0
          %228 = vmatpush1.msra.mxu0 %v194
          %229 = vmatprep.subr.mxu0 0.0
          %230 = vmatpush1.msra.mxu0 %v193
          %231 = vmatprep.subr.mxu0 0.0
          %232 = vmatpush2.msra.mxu0 0.0
          %233 = vmatprep.subr.mxu0 0.0
          %234 = vmatpush2.msra.mxu0 0.0
          %235 = vmatprep.subr.mxu0 0.0
          %236 = vmatpush2.msra.mxu0 0.0
          %237 = vmatprep.subr.mxu0 0.0
          %238 = vmatpush2.msra.mxu0 0.0
          %239 = vmatprep.subr.mxu0 0.0
          %240 = vmatpush2.msra.mxu0 0.0
          %241 = vmatprep.subr.mxu0 0.0
          %242 = vmatpush2.msra.mxu0 0.0
          %243 = vmatprep.subr.mxu0 0.0
          %244 = vmatpush2.msra.mxu0 0.0
          %245 = vmatprep.subr.mxu0 0.0
          %246 = vmatpush2.msra.mxu0 0.0
          %247 = vmatprep.subr.mxu0 0.0
          %248 = vmatpush2.msra.mxu0 0.0
          %249 = vmatprep.subr.mxu0 0.0
          %250 = vmatpush2.msra.mxu0 0.0
          %251 = vmatprep.subr.mxu0 0.0
          %252 = vmatpush2.msra.mxu0 0.0
          %253 = vmatprep.subr.mxu0 0.0
          %254 = vmatpush2.msra.mxu0 0.0
          %255 = vmatprep.subr.mxu0 0.0
          %256 = vmatpush2.msra.mxu0 0.0
          %257 = vmatprep.subr.mxu0 0.0
          %258 = vmatpush2.msra.mxu0 0.0
          %259 = vmatprep.subr.mxu0 0.0
          %260 = vmatpush2.msra.mxu0 0.0
          %261 = vmatprep.subr.mxu0 0.0
          %262 = vmatpush2.msra.mxu0 0.0
          %263 = vmatprep.mubr.f32.mxu0 0.0
          %264 = vmatmul.mubr.f32.gmra.mxu0 %v197
          %v265 = vpop.f32.mrf.mxu0
          %v266 = vadd.f32 0.0, %v265
          %v267 = vpop.f32.mrf.mxu0
          %268 = vdwg.mxu0
          %269 = vst [vmem:[#allocation2] sm:$0xff] %v266
          %v270 = vld [vmem:[#allocation8 + $0x8] sm:$0xff]
          %v271 = vld [vmem:[#allocation8 + $0x20] sm:$0xff]
          %272 = vmatprep.subr.mxu0 0.0
          %273 = vmatpush1.msra.mxu0 0.0
          %274 = vmatprep.subr.mxu0 0.0
          %275 = vmatpush1.msra.mxu0 0.0
          %276 = vmatprep.subr.mxu0 0.0
          %277 = vmatpush1.msra.mxu0 0.0
          %278 = vmatprep.subr.mxu0 0.0
          %279 = vmatpush1.msra.mxu0 0.0
          %280 = vmatprep.subr.mxu0 0.0
          %281 = vmatpush1.msra.mxu0 0.0
          %282 = vmatprep.subr.mxu0 0.0
          %283 = vmatpush1.msra.mxu0 0.0
          %284 = vmatprep.subr.mxu0 0.0
          %285 = vmatpush1.msra.mxu0 0.0
          %286 = vmatprep.subr.mxu0 0.0
          %287 = vmatpush1.msra.mxu0 0.0
          %288 = vmatprep.subr.mxu0 0.0
          %289 = vmatpush1.msra.mxu0 0.0
          %290 = vmatprep.subr.mxu0 0.0
          %291 = vmatpush1.msra.mxu0 0.0
          %292 = vmatprep.subr.mxu0 0.0
          %293 = vmatpush1.msra.mxu0 0.0
          %294 = vmatprep.subr.mxu0 0.0
          %295 = vmatpush1.msra.mxu0 0.0
          %296 = vmatprep.subr.mxu0 0.0
          %297 = vmatpush1.msra.mxu0 0.0
          %298 = vmatprep.subr.mxu0 0.0
          %299 = vmatpush1.msra.mxu0 0.0
          %300 = vmatprep.subr.mxu0 0.0
          %301 = vmatpush1.msra.mxu0 %v271
          %302 = vmatprep.subr.mxu0 0.0
          %303 = vmatpush1.msra.mxu0 %v270
          %304 = vmatprep.subr.mxu0 0.0
          %305 = vmatpush2.msra.mxu0 0.0
          %306 = vmatprep.subr.mxu0 0.0
          %307 = vmatpush2.msra.mxu0 0.0
          %308 = vmatprep.subr.mxu0 0.0
          %309 = vmatpush2.msra.mxu0 0.0
          %310 = vmatprep.subr.mxu0 0.0
          %311 = vmatpush2.msra.mxu0 0.0
          %312 = vmatprep.subr.mxu0 0.0
          %313 = vmatpush2.msra.mxu0 0.0
          %314 = vmatprep.subr.mxu0 0.0
          %315 = vmatpush2.msra.mxu0 0.0
          %316 = vmatprep.subr.mxu0 0.0
          %317 = vmatpush2.msra.mxu0 0.0
          %318 = vmatprep.subr.mxu0 0.0
          %319 = vmatpush2.msra.mxu0 0.0
          %320 = vmatprep.subr.mxu0 0.0
          %321 = vmatpush2.msra.mxu0 0.0
          %322 = vmatprep.subr.mxu0 0.0
          %323 = vmatpush2.msra.mxu0 0.0
          %324 = vmatprep.subr.mxu0 0.0
          %325 = vmatpush2.msra.mxu0 0.0
          %326 = vmatprep.subr.mxu0 0.0
          %327 = vmatpush2.msra.mxu0 0.0
          %328 = vmatprep.subr.mxu0 0.0
          %329 = vmatpush2.msra.mxu0 0.0
          %330 = vmatprep.subr.mxu0 0.0
          %331 = vmatpush2.msra.mxu0 0.0
          %332 = vmatprep.subr.mxu0 0.0
          %333 = vmatpush2.msra.mxu0 0.0
          %334 = vmatprep.subr.mxu0 0.0
          %335 = vmatpush2.msra.mxu0 0.0
          %336 = vmatprep.mubr.f32.mxu0 0.0
          %337 = vmatmul.mubr.f32.gmra.mxu0 %v197
          %v338 = vpop.f32.mrf.mxu0
          %v339 = vadd.f32 0.0, %v338
          %v340 = vpop.f32.mrf.mxu0
          %341 = vdwg.mxu0
          %342 = vst [vmem:[#allocation3] sm:$0xff] %v339
          %v343 = vld [vmem:[#allocation8 + $0x10] sm:$0xff]
          %v344 = vld [vmem:[#allocation8 + $0x28] sm:$0xff]
          %345 = vmatprep.subr.mxu0 0.0
          %346 = vmatpush1.msra.mxu0 0.0
          %347 = vmatprep.subr.mxu0 0.0
          %348 = vmatpush1.msra.mxu0 0.0
          %349 = vmatprep.subr.mxu0 0.0
          %350 = vmatpush1.msra.mxu0 0.0
          %351 = vmatprep.subr.mxu0 0.0
          %352 = vmatpush1.msra.mxu0 0.0
          %353 = vmatprep.subr.mxu0 0.0
          %354 = vmatpush1.msra.mxu0 0.0
          %355 = vmatprep.subr.mxu0 0.0
          %356 = vmatpush1.msra.mxu0 0.0
          %357 = vmatprep.subr.mxu0 0.0
          %358 = vmatpush1.msra.mxu0 0.0
          %359 = vmatprep.subr.mxu0 0.0
          %360 = vmatpush1.msra.mxu0 0.0
          %361 = vmatprep.subr.mxu0 0.0
          %362 = vmatpush1.msra.mxu0 0.0
          %363 = vmatprep.subr.mxu0 0.0
          %364 = vmatpush1.msra.mxu0 0.0
          %365 = vmatprep.subr.mxu0 0.0
          %366 = vmatpush1.msra.mxu0 0.0
          %367 = vmatprep.subr.mxu0 0.0
          %368 = vmatpush1.msra.mxu0 0.0
          %369 = vmatprep.subr.mxu0 0.0
          %370 = vmatpush1.msra.mxu0 0.0
          %371 = vmatprep.subr.mxu0 0.0
          %372 = vmatpush1.msra.mxu0 0.0
          %373 = vmatprep.subr.mxu0 0.0
          %374 = vmatpush1.msra.mxu0 %v344
          %375 = vmatprep.subr.mxu0 0.0
          %376 = vmatpush1.msra.mxu0 %v343
          %377 = vmatprep.subr.mxu0 0.0
          %378 = vmatpush2.msra.mxu0 0.0
          %379 = vmatprep.subr.mxu0 0.0
          %380 = vmatpush2.msra.mxu0 0.0
          %381 = vmatprep.subr.mxu0 0.0
          %382 = vmatpush2.msra.mxu0 0.0
          %383 = vmatprep.subr.mxu0 0.0
          %384 = vmatpush2.msra.mxu0 0.0
          %385 = vmatprep.subr.mxu0 0.0
          %386 = vmatpush2.msra.mxu0 0.0
          %387 = vmatprep.subr.mxu0 0.0
          %388 = vmatpush2.msra.mxu0 0.0
          %389 = vmatprep.subr.mxu0 0.0
          %390 = vmatpush2.msra.mxu0 0.0
          %391 = vmatprep.subr.mxu0 0.0
          %392 = vmatpush2.msra.mxu0 0.0
          %393 = vmatprep.subr.mxu0 0.0
          %394 = vmatpush2.msra.mxu0 0.0
          %395 = vmatprep.subr.mxu0 0.0
          %396 = vmatpush2.msra.mxu0 0.0
          %397 = vmatprep.subr.mxu0 0.0
          %398 = vmatpush2.msra.mxu0 0.0
          %399 = vmatprep.subr.mxu0 0.0
          %400 = vmatpush2.msra.mxu0 0.0
          %401 = vmatprep.subr.mxu0 0.0
          %402 = vmatpush2.msra.mxu0 0.0
          %403 = vmatprep.subr.mxu0 0.0
          %404 = vmatpush2.msra.mxu0 0.0
          %405 = vmatprep.subr.mxu0 0.0
          %406 = vmatpush2.msra.mxu0 0.0
          %407 = vmatprep.subr.mxu0 0.0
          %408 = vmatpush2.msra.mxu0 0.0
          %409 = vmatprep.mubr.f32.mxu0 0.0
          %410 = vmatmul.mubr.f32.gmra.mxu0 %v197
          %v411 = vpop.f32.mrf.mxu0
          %v412 = vadd.f32 0.0, %v411
          %v413 = vpop.f32.mrf.mxu0
          %414 = vdwg.mxu0
          %415 = vst [vmem:[#allocation4] sm:$0xff] %v412
        $region40: #{tpu_custom_call.1} parent=27 // pred_fallthru
          _
        %s416 = smul.u32 %s25, 8
        %s417 = scalar_lea.vmem [#allocation2], %s416
        %v418 = vld [vmem:[%s417] sm:$0xff]
        %v419 = vld [vmem:[#allocation3] sm:$0xff]
        %420 = vmatprep.subr.mxu0 0.0
        %421 = vmatpush1.xpose.msra.mxu0 0.0
        %422 = vmatprep.subr.mxu0 0.0
        %423 = vmatpush1.xpose.msra.mxu0 0.0
        %424 = vmatprep.subr.mxu0 0.0
        %425 = vmatpush1.xpose.msra.mxu0 0.0
        %426 = vmatprep.subr.mxu0 0.0
        %427 = vmatpush1.xpose.msra.mxu0 0.0
        %428 = vmatprep.subr.mxu0 0.0
        %429 = vmatpush1.xpose.msra.mxu0 0.0
        %430 = vmatprep.subr.mxu0 0.0
        %431 = vmatpush1.xpose.msra.mxu0 0.0
        %432 = vmatprep.subr.mxu0 0.0
        %433 = vmatpush1.xpose.msra.mxu0 0.0
        %434 = vmatprep.subr.mxu0 0.0
        %435 = vmatpush1.xpose.msra.mxu0 0.0
        %436 = vmatprep.subr.mxu0 0.0
        %437 = vmatpush1.xpose.msra.mxu0 0.0
        %438 = vmatprep.subr.mxu0 0.0
        %439 = vmatpush1.xpose.msra.mxu0 0.0
        %440 = vmatprep.subr.mxu0 0.0
        %441 = vmatpush1.xpose.msra.mxu0 0.0
        %442 = vmatprep.subr.mxu0 0.0
        %443 = vmatpush1.xpose.msra.mxu0 0.0
        %444 = vmatprep.subr.mxu0 0.0
        %445 = vmatpush1.xpose.msra.mxu0 0.0
        %446 = vmatprep.subr.mxu0 0.0
        %447 = vmatpush1.xpose.msra.mxu0 0.0
        %448 = vmatprep.subr.mxu0 0.0
        %449 = vmatpush1.xpose.msra.mxu0 0.0
        %450 = vmatprep.subr.mxu0 0.0
        %451 = vmatpush1.xpose.msra.mxu0 %v419
        %452 = vmatprep.subr.mxu0 0.0
        %453 = vmatpush2.xpose.msra.mxu0 0.0
        %454 = vmatprep.subr.mxu0 0.0
        %455 = vmatpush2.xpose.msra.mxu0 0.0
        %456 = vmatprep.subr.mxu0 0.0
        %457 = vmatpush2.xpose.msra.mxu0 0.0
        %458 = vmatprep.subr.mxu0 0.0
        %459 = vmatpush2.xpose.msra.mxu0 0.0
        %460 = vmatprep.subr.mxu0 0.0
        %461 = vmatpush2.xpose.msra.mxu0 0.0
        %462 = vmatprep.subr.mxu0 0.0
        %463 = vmatpush2.xpose.msra.mxu0 0.0
        %464 = vmatprep.subr.mxu0 0.0
        %465 = vmatpush2.xpose.msra.mxu0 0.0
        %466 = vmatprep.subr.mxu0 0.0
        %467 = vmatpush2.xpose.msra.mxu0 0.0
        %468 = vmatprep.subr.mxu0 0.0
        %469 = vmatpush2.xpose.msra.mxu0 0.0
        %470 = vmatprep.subr.mxu0 0.0
        %471 = vmatpush2.xpose.msra.mxu0 0.0
        %472 = vmatprep.subr.mxu0 0.0
        %473 = vmatpush2.xpose.msra.mxu0 0.0
        %474 = vmatprep.subr.mxu0 0.0
        %475 = vmatpush2.xpose.msra.mxu0 0.0
        %476 = vmatprep.subr.mxu0 0.0
        %477 = vmatpush2.xpose.msra.mxu0 0.0
        %478 = vmatprep.subr.mxu0 0.0
        %479 = vmatpush2.xpose.msra.mxu0 0.0
        %480 = vmatprep.subr.mxu0 0.0
        %481 = vmatpush2.xpose.msra.mxu0 0.0
        %482 = vmatprep.subr.mxu0 0.0
        %483 = vmatpush2.xpose.msra.mxu0 0.0
        %484 = vmatprep.mubr.f32.mxu0 0.0
        %485 = vmatmul.mubr.f32.gmra.mxu0 %v418
        %v486 = vpop.f32.mrf.mxu0
        %v487 = vadd.f32 0.0, %v486
        %v488 = vpop.f32.mrf.mxu0
        %489 = vdwg.mxu0
        %vm490 = vcmask 64512
        %v491 = vsel %vm490, %v487, -inf
        %492 = vmax.xlane.f32.xlu0 %v491
        %v493 = vpop.xlane.xlu0 %492
        %v494 = vsub.f32 %v487, %v493
        %v495 = vmul.f32 %v494, 1.442695
        %v496 = vpow.pop %v495
        %v497 = vsel %vm490, %v496, 0.0
        %498 = vadd.xlane.f32.xlu0 %v497
        %v499 = vpop.xlane.xlu0 %498
        %v500 = vrcp.pop %v499
        %v501 = vmul.f32 %v496, %v500
        %v502 = vld [vmem:[#allocation4] sm:$0xff]
        %v504 = vsel %vm490, %v501, 0
        %506 = vmatprep.subr.mxu0 0.0
        %507 = vmatpush1.msra.mxu0 0.0
        %508 = vmatprep.subr.mxu0 0.0
        %509 = vmatpush1.msra.mxu0 0.0
        %510 = vmatprep.subr.mxu0 0.0
        %511 = vmatpush1.msra.mxu0 0.0
        %512 = vmatprep.subr.mxu0 0.0
        %513 = vmatpush1.msra.mxu0 0.0
        %514 = vmatprep.subr.mxu0 0.0
        %515 = vmatpush1.msra.mxu0 0.0
        %516 = vmatprep.subr.mxu0 0.0
        %517 = vmatpush1.msra.mxu0 0.0
        %518 = vmatprep.subr.mxu0 0.0
        %519 = vmatpush1.msra.mxu0 0.0
        %520 = vmatprep.subr.mxu0 0.0
        %521 = vmatpush1.msra.mxu0 0.0
        %522 = vmatprep.subr.mxu0 0.0
        %523 = vmatpush1.msra.mxu0 0.0
        %524 = vmatprep.subr.mxu0 0.0
        %525 = vmatpush1.msra.mxu0 0.0
        %526 = vmatprep.subr.mxu0 0.0
        %527 = vmatpush1.msra.mxu0 0.0
        %528 = vmatprep.subr.mxu0 0.0
        %529 = vmatpush1.msra.mxu0 0.0
        %530 = vmatprep.subr.mxu0 0.0
        %531 = vmatpush1.msra.mxu0 0.0
        %532 = vmatprep.subr.mxu0 0.0
        %533 = vmatpush1.msra.mxu0 0.0
        %534 = vmatprep.subr.mxu0 0.0
        %535 = vmatpush1.msra.mxu0 0.0
        %536 = vmatprep.subr.mxu0 0.0
        %537 = vmatpush1.msra.mxu0 %v502
        %538 = vmatprep.subr.mxu0 0.0
        %539 = vmatpush2.msra.mxu0 0.0
        %540 = vmatprep.subr.mxu0 0.0
        %541 = vmatpush2.msra.mxu0 0.0
        %542 = vmatprep.subr.mxu0 0.0
        %543 = vmatpush2.msra.mxu0 0.0
        %544 = vmatprep.subr.mxu0 0.0
        %545 = vmatpush2.msra.mxu0 0.0
        %546 = vmatprep.subr.mxu0 0.0
        %547 = vmatpush2.msra.mxu0 0.0
        %548 = vmatprep.subr.mxu0 0.0
        %549 = vmatpush2.msra.mxu0 0.0
        %550 = vmatprep.subr.mxu0 0.0
        %551 = vmatpush2.msra.mxu0 0.0
        %552 = vmatprep.subr.mxu0 0.0
        %553 = vmatpush2.msra.mxu0 0.0
        %554 = vmatprep.subr.mxu0 0.0
        %555 = vmatpush2.msra.mxu0 0.0
        %556 = vmatprep.subr.mxu0 0.0
        %557 = vmatpush2.msra.mxu0 0.0
        %558 = vmatprep.subr.mxu0 0.0
        %559 = vmatpush2.msra.mxu0 0.0
        %560 = vmatprep.subr.mxu0 0.0
        %561 = vmatpush2.msra.mxu0 0.0
        %562 = vmatprep.subr.mxu0 0.0
        %563 = vmatpush2.msra.mxu0 0.0
        %564 = vmatprep.subr.mxu0 0.0
        %565 = vmatpush2.msra.mxu0 0.0
        %566 = vmatprep.subr.mxu0 0.0
        %567 = vmatpush2.msra.mxu0 0.0
        %568 = vmatprep.subr.mxu0 0.0
        %569 = vmatpush2.msra.mxu0 0.0
        %570 = vmatprep.mubr.f32.mxu0 0.0
        %571 = vmatmul.mubr.f32.gmra.mxu0 %v504
        %v572 = vpop.f32.mrf.mxu0
        %v573 = vadd.f32 0.0, %v572
        %v574 = vpop.f32.mrf.mxu0
        %575 = vdwg.mxu0
        %576 = vst [vmem:[%s187] sm:$0xff] %v573
        %s577 = sand.u32 %s89, 1
        %s578 = scalar_lea.sflag [#allocation7], %s577
        %s579 = sand.u32 %s89, 1
        %s580 = smul.addr %s579, 8
        %s581 = scalar_lea.vmem [#allocation10], %s580
        // Predicated region
        $region41: #{tpu_custom_call.1} parent=27 // pred_check
          %p582 = pneg %p99
        $region42: #{tpu_custom_call.1} parent=27 // pred_check_branch
          %584 = sbr.rel (%p582) target = $region44
        $region43: #{tpu_custom_call.1} parent=27 // pred_region
          %s586 = ssub.s32 128, 128
          %587 = vsyncadd %s578, %s586
          %s588 = sadd.s32 %s25, %s24
          %s589 = smul.addr %s588, 128
          %s590 = scalar_lea.hbm %s2, %s589
          %s592 = sshll.u32 %s581, 4
          %s593 = int_to_ptr.vmem [resolvable:$true] %s592
          %595 = dma.vmem_to_hbm [thread:$0]  %s593, 128, %s590, %s578
        $region44: #{tpu_custom_call.1} parent=27 // pred_fallthru
          _
      $region28: #{tpu_custom_call.1} parent=5 // pred_fallthru
        _
      %p596 = scmp.le.s32.totalorder 2, %s15
      // Predicated region
      $region45: #{tpu_custom_call.1} parent=5 // pred_check
        %p597 = pneg %p596
      $region46: #{tpu_custom_call.1} parent=5 // pred_check_branch
        %599 = sbr.rel (%p597) target = $region48
      $region47: #{tpu_custom_call.1} parent=5 // pred_region
        %s600 = ssub.s32 %s15, 2
        // Predicated region
        $region49: #{tpu_custom_call.1} parent=47 // pred_check
          %p601 = pneg %p105
        $region50: #{tpu_custom_call.1} parent=47 // pred_check_branch
          %603 = sbr.rel (%p601) target = $region52
        $region51: #{tpu_custom_call.1} parent=47 // pred_region
          %s604 = sand.u32 %s90, 1
          %s605 = scalar_lea.sflag [#allocation7], %s604
          %s606 = sand.u32 %s90, 1
          %s607 = smul.addr %s606, 8
          %s608 = scalar_lea.vmem [#allocation10], %s607
          %609 = dma.done %s605, 128
        $region52: #{tpu_custom_call.1} parent=47 // pred_fallthru
          _
      $region48: #{tpu_custom_call.1} parent=5 // pred_fallthru
        _
    $region6: #{tpu_custom_call.1} parent=1 // loop_footer
      %s19 = sadd.s32 1, %s15
    $region7: #{tpu_custom_call.1} parent=1 // loop_footer_branch
      %14 = sbr.rel target = $region3
    $region8: #{tpu_custom_call.1} parent=1 // loop_exit
      _
    %610 = vsyncpa [#allocation6], 1
    %s611 = scalar_lea.sflag [#allocation6], 1
    %612 = vsyncpa %s611, 1
    %613 = vsyncpa [#allocation9], 1
    %614 = vsyncpa [#allocation7], 1
    %s615 = scalar_lea.sflag [#allocation7], 1
    %616 = vsyncpa %s615, 1

// kernel: tpu_custom_call.1
$region0: #{tpu_custom_call.1}
  #allocation0 [shape = 'u32[]', space=smem, size = 0x4, offset = 0x4, fixed_abs, tag = 'smem constant byte address 0x4 - core index']
  #allocation1 [shape = 'u32[144,128]{1,0:T(1,128)}', space=vmem, size = 0x12000, scoped, tag = 'internal scratch']
  #allocation2 [shape = 'f32[8,128]{1,0:T(8,128)}', space=vmem, size = 0x1000, scoped, tag = 'scratch operand']
  #allocation3 [shape = 'f32[8,128]{1,0:T(8,128)}', space=vmem, size = 0x1000, scoped, tag = 'scratch operand']
  #allocation4 [shape = 'f32[8,128]{1,0:T(8,128)}', space=vmem, size = 0x1000, scoped, tag = 'scratch operand']
  %s0 = inlined_call_operand.hbm [shape: f32[2,8,16], index: 0, kind: input, shape index: {}]
  %s1 = inlined_call_operand.hbm [shape: f32[16,384], index: 1, kind: input, shape index: {}]
  %s2 = inlined_call_operand.hbm [shape: f32[2,8,128], index: 2, kind: output, shape index: {}]
  %s3 = sld [smem:[#allocation0]]
  $region53: #{tpu_custom_call.1} parent=0
    _
  %s5 = ssub.s32 1, %s3
  %s6 = scalar_select 0, %s5, %s3
  $region1: #{tpu_custom_call.1} parent=0
    #allocation5 [shape = 'u8[8192]{0}', space=vmem, size = 0x2000, scoped, tag = 'input window, operand 0']
    #allocation6 [shape = 's32[2]{0}', space=sflag, size = 0x8, scoped, tag = 'scoped memory for tpu_custom_call.1']
    #allocation7 [shape = 's32[2]{0}', space=sflag, size = 0x8, scoped, tag = 'scoped memory for tpu_custom_call.1']
    #allocation8 [shape = 'u8[24576]{0}', space=vmem, size = 0x6000, scoped, tag = 'input window, operand 1, single buffered']
    #allocation9 [shape = 's32[1]{0}', space=sflag, size = 0x4, scoped, tag = 'scoped memory for tpu_custom_call.1']
    #allocation10 [shape = 'u8[8192]{0}', space=vmem, size = 0x2000, scoped, tag = 'output window, operand 0']
    %7 = vsyncpa [#allocation6], 0
    %s8 = scalar_lea.sflag [#allocation6], 1
    %9 = vsyncpa %s8, 0
    %10 = vsyncpa [#allocation9], 0
    %11 = vsyncpa [#allocation7], 0
    %s12 = scalar_lea.sflag [#allocation7], 1
    %13 = vsyncpa %s12, 0
    loop: start=0, step=1, limit=4
    $region2: #{tpu_custom_call.1} parent=1 // loop_pre_header
      _
    $region3: #{tpu_custom_call.1} parent=1 // loop_header
      %s15 = sphi 0, %s19
      %p16 = scmp.ge.s32.totalorder %s15, 4
      %s22 = sphi 0, %s34
      %s23 = sphi 0, %s30
      %s24 = sphi 0, %s22
      %s25 = sphi 0, %s23
      %s26 = sphi 0, %s24
      %s27 = sphi 0, %s25
      %s37 = sphi 0, %s39
      %s40 = sphi 0, %s37
      %s41 = sphi 0, %s40
      %s57 = sphi 0, %s41
      %s61 = sphi 0, %s61
      %s63 = sphi 0, %s61
      %s64 = sphi 0, %s63
      %s78 = sphi 0, %s64
      %s86 = sphi 0, %s88
      %s89 = sphi 0, %s86
      %s90 = sphi 0, %s89
      %s106 = sphi 0, %s90
    $region4: #{tpu_custom_call.1} parent=1 // loop_header_branch
      %18 = sbr.rel (%p16) target = $region8
    $region5: #{tpu_custom_call.1} parent=1 // loop_body
      %s20 = ssub.s32 %s15, 1
      %s21 = ssub.s32 %s15, 2
      %s28 = sadd.s32 1, %s23
      %p29 = scmp.ge.s32.totalorder %s28, 1
      %s30 = scalar_select %p29, 0, %s28
      %s31 = sadd.s32 1, %s22
      %s32 = scalar_select %p29, %s31, %s22
      %p33 = scmp.ge.s32.totalorder %s32, 2
      %s34 = scalar_select %p33, 0, %s32
      %s35 = ssub.s32 %s22, %s34
      %p36 = scmp.eq.s32.totalorder %s35, 0
      %s38 = sadd.s32 %s37, 1
      %s39 = scalar_select %p36, %s37, %s38
      %p42 = pneg %p36
      %p43 = scmp.eq.s32.totalorder %s15, 1
      %p44 = por %p42, %p43
      %p45 = scmp.ne.s32.totalorder %s37, %s40
      %p46 = scmp.eq.s32.totalorder %s15, 0
      %p47 = por %p45, %p46
      %p48 = scmp.ne.s32.totalorder %s37, %s40
      %p49 = scmp.eq.s32.totalorder %s20, 1
      %p50 = por %p48, %p49
      %p51 = scmp.ne.s32.totalorder %s40, %s41
      %p52 = scmp.eq.s32.totalorder %s20, 0
      %p53 = por %p51, %p52
      %p54 = scmp.ne.s32.totalorder %s40, %s41
      %p55 = scmp.eq.s32.totalorder %s21, 1
      %p56 = por %p54, %p55
      %p58 = scmp.ne.s32.totalorder %s41, %s57
      %p59 = scmp.eq.s32.totalorder %s21, 0
      %p60 = por %p58, %p59
      %s62 = sadd.s32 %s61, 1
      %p65 = scmp.eq.s32.totalorder %s15, 1
      %p66 = scmp.ne.s32.totalorder %s61, %s63
      %p67 = scmp.eq.s32.totalorder %s15, 0
      %p68 = por %p66, %p67
      %p69 = scmp.ne.s32.totalorder %s61, %s63
      %p70 = scmp.eq.s32.totalorder %s20, 1
      %p71 = por %p69, %p70
      %p72 = scmp.ne.s32.totalorder %s63, %s64
      %p73 = scmp.eq.s32.totalorder %s20, 0
      %p74 = por %p72, %p73
      %p75 = scmp.ne.s32.totalorder %s63, %s64
      %p76 = scmp.eq.s32.totalorder %s21, 1
      %p77 = por %p75, %p76
      %p79 = scmp.ne.s32.totalorder %s64, %s78
      %p80 = scmp.eq.s32.totalorder %s21, 0
      %p81 = por %p79, %p80
      %s82 = ssub.s32 %s22, %s34
      %s83 = ssub.s32 %s23, %s30
      %s84 = sor.u32 %s82, %s83
      %p85 = scmp.eq.s32.totalorder %s84, 0
      %s87 = sadd.s32 %s86, 1
      %s88 = scalar_select %p85, %s86, %s87
      %p91 = pneg %p85
      %p92 = scmp.eq.s32.totalorder %s15, 1
      %p93 = por %p91, %p92
      %p94 = scmp.ne.s32.totalorder %s86, %s89
      %p95 = scmp.eq.s32.totalorder %s15, 0
      %p96 = por %p94, %p95
      %p97 = scmp.ne.s32.totalorder %s86, %s89
      %p98 = scmp.eq.s32.totalorder %s20, 1
      %p99 = por %p97, %p98
      %p100 = scmp.ne.s32.totalorder %s89, %s90
      %p101 = scmp.eq.s32.totalorder %s20, 0
      %p102 = por %p100, %p101
      %p103 = scmp.ne.s32.totalorder %s89, %s90
      %p104 = scmp.eq.s32.totalorder %s21, 1
      %p105 = por %p103, %p104
      %p107 = scmp.ne.s32.totalorder %s90, %s106
      %p108 = scmp.eq.s32.totalorder %s21, 0
      %p109 = por %p107, %p108
      %p110 = scmp.le.s32.totalorder 1, %s15
      %p111 = scmp.lt.s32.totalorder %s15, 3
      %p112 = pnand %p110, %p111
      %p113 = pneg %p112
      // Predicated region
      $region9: #{tpu_custom_call.1} parent=5 // pred_check
        _
      $region10: #{tpu_custom_call.1} parent=5 // pred_check_branch
        %115 = sbr.rel (%p112) target = $region12
      $region11: #{tpu_custom_call.1} parent=5 // pred_region
        %s116 = ssub.s32 %s15, 1
        // Predicated region
        $region13: #{tpu_custom_call.1} parent=11 // pred_check
          %p117 = pneg %p74
        $region14: #{tpu_custom_call.1} parent=11 // pred_check_branch
          %119 = sbr.rel (%p117) target = $region16
        $region15: #{tpu_custom_call.1} parent=11 // pred_region
          %s121 = ssub.s32 768, 768
          %122 = vsyncadd [#allocation9], %s121
          %s123 = sshll.u32 [#allocation8], 4
          %s124 = int_to_ptr.vmem [resolvable:$true] %s123
          %129 = dma.hbm_to_vmem [thread:$0]  %s1, 768, %s124, [#allocation9], 384, 384, 24
        $region16: #{tpu_custom_call.1} parent=11 // pred_fallthru
          _
      $region12: #{tpu_custom_call.1} parent=5 // pred_fallthru
        _
      %p130 = scmp.lt.s32.totalorder %s15, 2
      // Predicated region
      $region17: #{tpu_custom_call.1} parent=5 // pred_check
        %p131 = pneg %p130
      $region18: #{tpu_custom_call.1} parent=5 // pred_check_branch
        %133 = sbr.rel (%p131) target = $region20
      $region19: #{tpu_custom_call.1} parent=5 // pred_region
        // Predicated region
        $region21: #{tpu_custom_call.1} parent=19 // pred_check
          %p134 = pneg %p47
        $region22: #{tpu_custom_call.1} parent=19 // pred_check_branch
          %136 = sbr.rel (%p134) target = $region24
        $region23: #{tpu_custom_call.1} parent=19 // pred_region
          %s137 = sand.u32 %s37, 1
          %s138 = scalar_lea.sflag [#allocation6], %s137
          %s139 = sand.u32 %s37, 1
          %s140 = smul.addr %s139, 8
          %s141 = scalar_lea.vmem [#allocation5], %s140
          %s143 = ssub.s32 128, 128
          %144 = vsyncadd %s138, %s143
          %s145 = smul.addr %s22, 128
          %s146 = scalar_lea.hbm %s0, %s145
          %s148 = sshll.u32 %s141, 4
          %s149 = int_to_ptr.vmem [resolvable:$true] %s148
          %151 = dma.hbm_to_vmem [thread:$0]  %s146, 128, %s149, %s138
        $region24: #{tpu_custom_call.1} parent=19 // pred_fallthru
          _
      $region20: #{tpu_custom_call.1} parent=5 // pred_fallthru
        _
      %p152 = scmp.le.s32.totalorder 1, %s15
      %p153 = scmp.lt.s32.totalorder %s15, 3
      %p154 = pnand %p152, %p153
      %p155 = pneg %p154
      // Predicated region
      $region25: #{tpu_custom_call.1} parent=5 // pred_check
        _
      $region26: #{tpu_custom_call.1} parent=5 // pred_check_branch
        %157 = sbr.rel (%p154) target = $region28
      $region27: #{tpu_custom_call.1} parent=5 // pred_region
        %s158 = ssub.s32 %s15, 1
        %s159 = sand.u32 %s40, 1
        %s160 = scalar_lea.sflag [#allocation6], %s159
        %s161 = sand.u32 %s40, 1
        %s162 = smul.addr %s161, 8
        %s163 = scalar_lea.vmem [#allocation5], %s162
        // Predicated region
        $region29: #{tpu_custom_call.1} parent=27 // pred_check
          %p164 = pneg %p53
        $region30: #{tpu_custom_call.1} parent=27 // pred_check_branch
          %166 = sbr.rel (%p164) target = $region32
        $region31: #{tpu_custom_call.1} parent=27 // pred_region
          %167 = dma.done %s160, 128
        $region32: #{tpu_custom_call.1} parent=27 // pred_fallthru
          _
        // Predicated region
        $region33: #{tpu_custom_call.1} parent=27 // pred_check
          %p168 = pneg %p74
        $region34: #{tpu_custom_call.1} parent=27 // pred_check_branch
          %170 = sbr.rel (%p168) target = $region36
        $region35: #{tpu_custom_call.1} parent=27 // pred_region
          %171 = dma.done [#allocation9], 768
        $region36: #{tpu_custom_call.1} parent=27 // pred_fallthru
          _
        %s172 = sand.u32 %s40, 1
        %s173 = scalar_lea.sflag [#allocation6], %s172
        %s174 = sand.u32 %s40, 1
        %s175 = smul.addr %s174, 8
        %s176 = scalar_lea.vmem [#allocation5], %s175
        %p177 = pneg %p53
        %p178 = pneg %p50
        %p179 = pneg %p74
        %p180 = pneg %p71
        %p181 = pneg %p102
        %p182 = pneg %p99
        %s183 = sand.u32 %s89, 1
        %s184 = scalar_lea.sflag [#allocation7], %s183
        %s185 = sand.u32 %s89, 1
        %s186 = smul.addr %s185, 8
        %s187 = scalar_lea.vmem [#allocation10], %s186
        %p188 = scmp.eq.s32.totalorder %s25, 0
        // Predicated region
        $region37: #{tpu_custom_call.1} parent=27 // pred_check
          %p189 = pneg %p188
        $region38: #{tpu_custom_call.1} parent=27 // pred_check_branch
          %191 = sbr.rel (%p189) target = $region40
        $region39: #{tpu_custom_call.1} parent=27 // pred_region
          %v192 = vld [vmem:[%s163] sm:$0xff]
          %v193 = vld [vmem:[#allocation8] sm:$0xff]
          %v194 = vld [vmem:[#allocation8 + $0x18] sm:$0xff]
          %vm195 = vcmask 130048
          %v197 = vsel %vm195, %v192, 0
          %199 = vmatprep.subr.mxu0 0.0
          %200 = vmatpush1.msra.mxu0 0.0
          %201 = vmatprep.subr.mxu0 0.0
          %202 = vmatpush1.msra.mxu0 0.0
          %203 = vmatprep.subr.mxu0 0.0
          %204 = vmatpush1.msra.mxu0 0.0
          %205 = vmatprep.subr.mxu0 0.0
          %206 = vmatpush1.msra.mxu0 0.0
          %207 = vmatprep.subr.mxu0 0.0
          %208 = vmatpush1.msra.mxu0 0.0
          %209 = vmatprep.subr.mxu0 0.0
          %210 = vmatpush1.msra.mxu0 0.0
          %211 = vmatprep.subr.mxu0 0.0
          %212 = vmatpush1.msra.mxu0 0.0
          %213 = vmatprep.subr.mxu0 0.0
          %214 = vmatpush1.msra.mxu0 0.0
          %215 = vmatprep.subr.mxu0 0.0
          %216 = vmatpush1.msra.mxu0 0.0
          %217 = vmatprep.subr.mxu0 0.0
          %218 = vmatpush1.msra.mxu0 0.0
          %219 = vmatprep.subr.mxu0 0.0
          %220 = vmatpush1.msra.mxu0 0.0
          %221 = vmatprep.subr.mxu0 0.0
          %222 = vmatpush1.msra.mxu0 0.0
          %223 = vmatprep.subr.mxu0 0.0
          %224 = vmatpush1.msra.mxu0 0.0
          %225 = vmatprep.subr.mxu0 0.0
          %226 = vmatpush1.msra.mxu0 0.0
          %227 = vmatprep.subr.mxu0 0.0
          %228 = vmatpush1.msra.mxu0 %v194
          %229 = vmatprep.subr.mxu0 0.0
          %230 = vmatpush1.msra.mxu0 %v193
          %231 = vmatprep.subr.mxu0 0.0
          %232 = vmatpush2.msra.mxu0 0.0
          %233 = vmatprep.subr.mxu0 0.0
          %234 = vmatpush2.msra.mxu0 0.0
          %235 = vmatprep.subr.mxu0 0.0
          %236 = vmatpush2.msra.mxu0 0.0
          %237 = vmatprep.subr.mxu0 0.0
          %238 = vmatpush2.msra.mxu0 0.0
          %239 = vmatprep.subr.mxu0 0.0
          %240 = vmatpush2.msra.mxu0 0.0
          %241 = vmatprep.subr.mxu0 0.0
          %242 = vmatpush2.msra.mxu0 0.0
          %243 = vmatprep.subr.mxu0 0.0
          %244 = vmatpush2.msra.mxu0 0.0
          %245 = vmatprep.subr.mxu0 0.0
          %246 = vmatpush2.msra.mxu0 0.0
          %247 = vmatprep.subr.mxu0 0.0
          %248 = vmatpush2.msra.mxu0 0.0
          %249 = vmatprep.subr.mxu0 0.0
          %250 = vmatpush2.msra.mxu0 0.0
          %251 = vmatprep.subr.mxu0 0.0
          %252 = vmatpush2.msra.mxu0 0.0
          %253 = vmatprep.subr.mxu0 0.0
          %254 = vmatpush2.msra.mxu0 0.0
          %255 = vmatprep.subr.mxu0 0.0
          %256 = vmatpush2.msra.mxu0 0.0
          %257 = vmatprep.subr.mxu0 0.0
          %258 = vmatpush2.msra.mxu0 0.0
          %259 = vmatprep.subr.mxu0 0.0
          %260 = vmatpush2.msra.mxu0 0.0
          %261 = vmatprep.subr.mxu0 0.0
          %262 = vmatpush2.msra.mxu0 0.0
          %263 = vmatprep.mubr.f32.mxu0 0.0
          %264 = vmatmul.mubr.f32.gmra.mxu0 %v197
          %v265 = vpop.f32.mrf.mxu0
          %v266 = vadd.f32 0.0, %v265
          %v267 = vpop.f32.mrf.mxu0
          %268 = vdwg.mxu0
          %269 = vst [vmem:[#allocation2] sm:$0xff] %v266
          %v270 = vld [vmem:[#allocation8 + $0x8] sm:$0xff]
          %v271 = vld [vmem:[#allocation8 + $0x20] sm:$0xff]
          %272 = vmatprep.subr.mxu0 0.0
          %273 = vmatpush1.msra.mxu0 0.0
          %274 = vmatprep.subr.mxu0 0.0
          %275 = vmatpush1.msra.mxu0 0.0
          %276 = vmatprep.subr.mxu0 0.0
          %277 = vmatpush1.msra.mxu0 0.0
          %278 = vmatprep.subr.mxu0 0.0
          %279 = vmatpush1.msra.mxu0 0.0
          %280 = vmatprep.subr.mxu0 0.0
          %281 = vmatpush1.msra.mxu0 0.0
          %282 = vmatprep.subr.mxu0 0.0
          %283 = vmatpush1.msra.mxu0 0.0
          %284 = vmatprep.subr.mxu0 0.0
          %285 = vmatpush1.msra.mxu0 0.0
          %286 = vmatprep.subr.mxu0 0.0
          %287 = vmatpush1.msra.mxu0 0.0
          %288 = vmatprep.subr.mxu0 0.0
          %289 = vmatpush1.msra.mxu0 0.0
          %290 = vmatprep.subr.mxu0 0.0
          %291 = vmatpush1.msra.mxu0 0.0
          %292 = vmatprep.subr.mxu0 0.0
          %293 = vmatpush1.msra.mxu0 0.0
          %294 = vmatprep.subr.mxu0 0.0
          %295 = vmatpush1.msra.mxu0 0.0
          %296 = vmatprep.subr.mxu0 0.0
          %297 = vmatpush1.msra.mxu0 0.0
          %298 = vmatprep.subr.mxu0 0.0
          %299 = vmatpush1.msra.mxu0 0.0
          %300 = vmatprep.subr.mxu0 0.0
          %301 = vmatpush1.msra.mxu0 %v271
          %302 = vmatprep.subr.mxu0 0.0
          %303 = vmatpush1.msra.mxu0 %v270
          %304 = vmatprep.subr.mxu0 0.0
          %305 = vmatpush2.msra.mxu0 0.0
          %306 = vmatprep.subr.mxu0 0.0
          %307 = vmatpush2.msra.mxu0 0.0
          %308 = vmatprep.subr.mxu0 0.0
          %309 = vmatpush2.msra.mxu0 0.0
          %310 = vmatprep.subr.mxu0 0.0
          %311 = vmatpush2.msra.mxu0 0.0
          %312 = vmatprep.subr.mxu0 0.0
          %313 = vmatpush2.msra.mxu0 0.0
          %314 = vmatprep.subr.mxu0 0.0
          %315 = vmatpush2.msra.mxu0 0.0
          %316 = vmatprep.subr.mxu0 0.0
          %317 = vmatpush2.msra.mxu0 0.0
          %318 = vmatprep.subr.mxu0 0.0
          %319 = vmatpush2.msra.mxu0 0.0
          %320 = vmatprep.subr.mxu0 0.0
          %321 = vmatpush2.msra.mxu0 0.0
          %322 = vmatprep.subr.mxu0 0.0
          %323 = vmatpush2.msra.mxu0 0.0
          %324 = vmatprep.subr.mxu0 0.0
          %325 = vmatpush2.msra.mxu0 0.0
          %326 = vmatprep.subr.mxu0 0.0
          %327 = vmatpush2.msra.mxu0 0.0
          %328 = vmatprep.subr.mxu0 0.0
          %329 = vmatpush2.msra.mxu0 0.0
          %330 = vmatprep.subr.mxu0 0.0
          %331 = vmatpush2.msra.mxu0 0.0
          %332 = vmatprep.subr.mxu0 0.0
          %333 = vmatpush2.msra.mxu0 0.0
          %334 = vmatprep.subr.mxu0 0.0
          %335 = vmatpush2.msra.mxu0 0.0
          %336 = vmatprep.mubr.f32.mxu0 0.0
          %337 = vmatmul.mubr.f32.gmra.mxu0 %v197
          %v338 = vpop.f32.mrf.mxu0
          %v339 = vadd.f32 0.0, %v338
          %v340 = vpop.f32.mrf.mxu0
          %341 = vdwg.mxu0
          %342 = vst [vmem:[#allocation3] sm:$0xff] %v339
          %v343 = vld [vmem:[#allocation8 + $0x10] sm:$0xff]
          %v344 = vld [vmem:[#allocation8 + $0x28] sm:$0xff]
          %345 = vmatprep.subr.mxu0 0.0
          %346 = vmatpush1.msra.mxu0 0.0
          %347 = vmatprep.subr.mxu0 0.0
          %348 = vmatpush1.msra.mxu0 0.0
          %349 = vmatprep.subr.mxu0 0.0
          %350 = vmatpush1.msra.mxu0 0.0
          %351 = vmatprep.subr.mxu0 0.0
          %352 = vmatpush1.msra.mxu0 0.0
          %353 = vmatprep.subr.mxu0 0.0
          %354 = vmatpush1.msra.mxu0 0.0
          %355 = vmatprep.subr.mxu0 0.0
          %356 = vmatpush1.msra.mxu0 0.0
          %357 = vmatprep.subr.mxu0 0.0
          %358 = vmatpush1.msra.mxu0 0.0
          %359 = vmatprep.subr.mxu0 0.0
          %360 = vmatpush1.msra.mxu0 0.0
          %361 = vmatprep.subr.mxu0 0.0
          %362 = vmatpush1.msra.mxu0 0.0
          %363 = vmatprep.subr.mxu0 0.0
          %364 = vmatpush1.msra.mxu0 0.0
          %365 = vmatprep.subr.mxu0 0.0
          %366 = vmatpush1.msra.mxu0 0.0
          %367 = vmatprep.subr.mxu0 0.0
          %368 = vmatpush1.msra.mxu0 0.0
          %369 = vmatprep.subr.mxu0 0.0
          %370 = vmatpush1.msra.mxu0 0.0
          %371 = vmatprep.subr.mxu0 0.0
          %372 = vmatpush1.msra.mxu0 0.0
          %373 = vmatprep.subr.mxu0 0.0
          %374 = vmatpush1.msra.mxu0 %v344
          %375 = vmatprep.subr.mxu0 0.0
          %376 = vmatpush1.msra.mxu0 %v343
          %377 = vmatprep.subr.mxu0 0.0
          %378 = vmatpush2.msra.mxu0 0.0
          %379 = vmatprep.subr.mxu0 0.0
          %380 = vmatpush2.msra.mxu0 0.0
          %381 = vmatprep.subr.mxu0 0.0
          %382 = vmatpush2.msra.mxu0 0.0
          %383 = vmatprep.subr.mxu0 0.0
          %384 = vmatpush2.msra.mxu0 0.0
          %385 = vmatprep.subr.mxu0 0.0
          %386 = vmatpush2.msra.mxu0 0.0
          %387 = vmatprep.subr.mxu0 0.0
          %388 = vmatpush2.msra.mxu0 0.0
          %389 = vmatprep.subr.mxu0 0.0
          %390 = vmatpush2.msra.mxu0 0.0
          %391 = vmatprep.subr.mxu0 0.0
          %392 = vmatpush2.msra.mxu0 0.0
          %393 = vmatprep.subr.mxu0 0.0
          %394 = vmatpush2.msra.mxu0 0.0
          %395 = vmatprep.subr.mxu0 0.0
          %396 = vmatpush2.msra.mxu0 0.0
          %397 = vmatprep.subr.mxu0 0.0
          %398 = vmatpush2.msra.mxu0 0.0
          %399 = vmatprep.subr.mxu0 0.0
          %400 = vmatpush2.msra.mxu0 0.0
          %401 = vmatprep.subr.mxu0 0.0
          %402 = vmatpush2.msra.mxu0 0.0
          %403 = vmatprep.subr.mxu0 0.0
          %404 = vmatpush2.msra.mxu0 0.0
          %405 = vmatprep.subr.mxu0 0.0
          %406 = vmatpush2.msra.mxu0 0.0
          %407 = vmatprep.subr.mxu0 0.0
          %408 = vmatpush2.msra.mxu0 0.0
          %409 = vmatprep.mubr.f32.mxu0 0.0
          %410 = vmatmul.mubr.f32.gmra.mxu0 %v197
          %v411 = vpop.f32.mrf.mxu0
          %v412 = vadd.f32 0.0, %v411
          %v413 = vpop.f32.mrf.mxu0
          %414 = vdwg.mxu0
          %415 = vst [vmem:[#allocation4] sm:$0xff] %v412
        $region40: #{tpu_custom_call.1} parent=27 // pred_fallthru
          _
        %s416 = smul.u32 %s25, 8
        %s417 = scalar_lea.vmem [#allocation2], %s416
        %v418 = vld [vmem:[%s417] sm:$0xff]
        %v419 = vld [vmem:[#allocation3] sm:$0xff]
        %420 = vmatprep.subr.mxu0 0.0
        %421 = vmatpush1.xpose.msra.mxu0 0.0
        %422 = vmatprep.subr.mxu0 0.0
        %423 = vmatpush1.xpose.msra.mxu0 0.0
        %424 = vmatprep.subr.mxu0 0.0
        %425 = vmatpush1.xpose.msra.mxu0 0.0
        %426 = vmatprep.subr.mxu0 0.0
        %427 = vmatpush1.xpose.msra.mxu0 0.0
        %428 = vmatprep.subr.mxu0 0.0
        %429 = vmatpush1.xpose.msra.mxu0 0.0
        %430 = vmatprep.subr.mxu0 0.0
        %431 = vmatpush1.xpose.msra.mxu0 0.0
        %432 = vmatprep.subr.mxu0 0.0
        %433 = vmatpush1.xpose.msra.mxu0 0.0
        %434 = vmatprep.subr.mxu0 0.0
        %435 = vmatpush1.xpose.msra.mxu0 0.0
        %436 = vmatprep.subr.mxu0 0.0
        %437 = vmatpush1.xpose.msra.mxu0 0.0
        %438 = vmatprep.subr.mxu0 0.0
        %439 = vmatpush1.xpose.msra.mxu0 0.0
        %440 = vmatprep.subr.mxu0 0.0
        %441 = vmatpush1.xpose.msra.mxu0 0.0
        %442 = vmatprep.subr.mxu0 0.0
        %443 = vmatpush1.xpose.msra.mxu0 0.0
        %444 = vmatprep.subr.mxu0 0.0
        %445 = vmatpush1.xpose.msra.mxu0 0.0
        %446 = vmatprep.subr.mxu0 0.0
        %447 = vmatpush1.xpose.msra.mxu0 0.0
        %448 = vmatprep.subr.mxu0 0.0
        %449 = vmatpush1.xpose.msra.mxu0 0.0
        %450 = vmatprep.subr.mxu0 0.0
        %451 = vmatpush1.xpose.msra.mxu0 %v419
        %452 = vmatprep.subr.mxu0 0.0
        %453 = vmatpush2.xpose.msra.mxu0 0.0
        %454 = vmatprep.subr.mxu0 0.0
        %455 = vmatpush2.xpose.msra.mxu0 0.0
        %456 = vmatprep.subr.mxu0 0.0
        %457 = vmatpush2.xpose.msra.mxu0 0.0
        %458 = vmatprep.subr.mxu0 0.0
        %459 = vmatpush2.xpose.msra.mxu0 0.0
        %460 = vmatprep.subr.mxu0 0.0
        %461 = vmatpush2.xpose.msra.mxu0 0.0
        %462 = vmatprep.subr.mxu0 0.0
        %463 = vmatpush2.xpose.msra.mxu0 0.0
        %464 = vmatprep.subr.mxu0 0.0
        %465 = vmatpush2.xpose.msra.mxu0 0.0
        %466 = vmatprep.subr.mxu0 0.0
        %467 = vmatpush2.xpose.msra.mxu0 0.0
        %468 = vmatprep.subr.mxu0 0.0
        %469 = vmatpush2.xpose.msra.mxu0 0.0
        %470 = vmatprep.subr.mxu0 0.0
        %471 = vmatpush2.xpose.msra.mxu0 0.0
        %472 = vmatprep.subr.mxu0 0.0
        %473 = vmatpush2.xpose.msra.mxu0 0.0
        %474 = vmatprep.subr.mxu0 0.0
        %475 = vmatpush2.xpose.msra.mxu0 0.0
        %476 = vmatprep.subr.mxu0 0.0
        %477 = vmatpush2.xpose.msra.mxu0 0.0
        %478 = vmatprep.subr.mxu0 0.0
        %479 = vmatpush2.xpose.msra.mxu0 0.0
        %480 = vmatprep.subr.mxu0 0.0
        %481 = vmatpush2.xpose.msra.mxu0 0.0
        %482 = vmatprep.subr.mxu0 0.0
        %483 = vmatpush2.xpose.msra.mxu0 0.0
        %484 = vmatprep.mubr.f32.mxu0 0.0
        %485 = vmatmul.mubr.f32.gmra.mxu0 %v418
        %v486 = vpop.f32.mrf.mxu0
        %v487 = vadd.f32 0.0, %v486
        %v488 = vpop.f32.mrf.mxu0
        %489 = vdwg.mxu0
        %vm490 = vcmask 64512
        %v491 = vsel %vm490, %v487, -inf
        %492 = vmax.xlane.f32.xlu0 %v491
        %v493 = vpop.xlane.xlu0 %492
        %v494 = vsub.f32 %v487, %v493
        %v495 = vmul.f32 %v494, 1.442695
        %v496 = vpow.pop %v495
        %v497 = vsel %vm490, %v496, 0.0
        %498 = vadd.xlane.f32.xlu0 %v497
        %v499 = vpop.xlane.xlu0 %498
        %v500 = vrcp.pop %v499
        %v501 = vmul.f32 %v496, %v500
        %v502 = vld [vmem:[#allocation4] sm:$0xff]
        %v504 = vsel %vm490, %v501, 0
        %506 = vmatprep.subr.mxu0 0.0
        %507 = vmatpush1.msra.mxu0 0.0
        %508 = vmatprep.subr.mxu0 0.0
        %509 = vmatpush1.msra.mxu0 0.0
        %510 = vmatprep.subr.mxu0 0.0
        %511 = vmatpush1.msra.mxu0 0.0
        %512 = vmatprep.subr.mxu0 0.0
        %513 = vmatpush1.msra.mxu0 0.0
        %514 = vmatprep.subr.mxu0 0.0
        %515 = vmatpush1.msra.mxu0 0.0
        %516 = vmatprep.subr.mxu0 0.0
        %517 = vmatpush1.msra.mxu0 0.0
        %518 = vmatprep.subr.mxu0 0.0
        %519 = vmatpush1.msra.mxu0 0.0
        %520 = vmatprep.subr.mxu0 0.0
        %521 = vmatpush1.msra.mxu0 0.0
        %522 = vmatprep.subr.mxu0 0.0
        %523 = vmatpush1.msra.mxu0 0.0
        %524 = vmatprep.subr.mxu0 0.0
        %525 = vmatpush1.msra.mxu0 0.0
        %526 = vmatprep.subr.mxu0 0.0
        %527 = vmatpush1.msra.mxu0 0.0
        %528 = vmatprep.subr.mxu0 0.0
        %529 = vmatpush1.msra.mxu0 0.0
        %530 = vmatprep.subr.mxu0 0.0
        %531 = vmatpush1.msra.mxu0 0.0
        %532 = vmatprep.subr.mxu0 0.0
        %533 = vmatpush1.msra.mxu0 0.0
        %534 = vmatprep.subr.mxu0 0.0
        %535 = vmatpush1.msra.mxu0 0.0
        %536 = vmatprep.subr.mxu0 0.0
        %537 = vmatpush1.msra.mxu0 %v502
        %538 = vmatprep.subr.mxu0 0.0
        %539 = vmatpush2.msra.mxu0 0.0
        %540 = vmatprep.subr.mxu0 0.0
        %541 = vmatpush2.msra.mxu0 0.0
        %542 = vmatprep.subr.mxu0 0.0
        %543 = vmatpush2.msra.mxu0 0.0
        %544 = vmatprep.subr.mxu0 0.0
        %545 = vmatpush2.msra.mxu0 0.0
        %546 = vmatprep.subr.mxu0 0.0
        %547 = vmatpush2.msra.mxu0 0.0
        %548 = vmatprep.subr.mxu0 0.0
        %549 = vmatpush2.msra.mxu0 0.0
        %550 = vmatprep.subr.mxu0 0.0
        %551 = vmatpush2.msra.mxu0 0.0
        %552 = vmatprep.subr.mxu0 0.0
        %553 = vmatpush2.msra.mxu0 0.0
        %554 = vmatprep.subr.mxu0 0.0
        %555 = vmatpush2.msra.mxu0 0.0
        %556 = vmatprep.subr.mxu0 0.0
        %557 = vmatpush2.msra.mxu0 0.0
        %558 = vmatprep.subr.mxu0 0.0
        %559 = vmatpush2.msra.mxu0 0.0
        %560 = vmatprep.subr.mxu0 0.0
        %561 = vmatpush2.msra.mxu0 0.0
        %562 = vmatprep.subr.mxu0 0.0
        %563 = vmatpush2.msra.mxu0 0.0
        %564 = vmatprep.subr.mxu0 0.0
        %565 = vmatpush2.msra.mxu0 0.0
        %566 = vmatprep.subr.mxu0 0.0
        %567 = vmatpush2.msra.mxu0 0.0
        %568 = vmatprep.subr.mxu0 0.0
        %569 = vmatpush2.msra.mxu0 0.0
        %570 = vmatprep.mubr.f32.mxu0 0.0
        %571 = vmatmul.mubr.f32.gmra.mxu0 %v504
        %v572 = vpop.f32.mrf.mxu0
        %v573 = vadd.f32 0.0, %v572
        %v574 = vpop.f32.mrf.mxu0
        %575 = vdwg.mxu0
        %576 = vst [vmem:[%s187] sm:$0xff] %v573
        %s577 = sand.u32 %s89, 1
        %s578 = scalar_lea.sflag [#allocation7], %s577
        %s579 = sand.u32 %s89, 1
        %s580 = smul.addr %s579, 8
        %s581 = scalar_lea.vmem [#allocation10], %s580
        // Predicated region
        $region41: #{tpu_custom_call.1} parent=27 // pred_check
          %p582 = pneg %p99
        $region42: #{tpu_custom_call.1} parent=27 // pred_check_branch
          %584 = sbr.rel (%p582) target = $region44
        $region43: #{tpu_custom_call.1} parent=27 // pred_region
          %s586 = ssub.s32 128, 128
          %587 = vsyncadd %s578, %s586
          %s588 = sadd.s32 %s25, %s24
          %s589 = smul.addr %s588, 128
          %s590 = scalar_lea.hbm %s2, %s589
          %s592 = sshll.u32 %s581, 4
          %s593 = int_to_ptr.vmem [resolvable:$true] %s592
          %595 = dma.vmem_to_hbm [thread:$0]  %s593, 128, %s590, %s578
        $region44: #{tpu_custom_call.1} parent=27 // pred_fallthru
          _
      $region28: #{tpu_custom_call.1} parent=5 // pred_fallthru
        _
      %p596 = scmp.le.s32.totalorder 2, %s15
      // Predicated region
      $region45: #{tpu_custom_call.1} parent=5 // pred_check
        %p597 = pneg %p596
      $region46: #{tpu_custom_call.1} parent=5 // pred_check_branch
        %599 = sbr.rel (%p597) target = $region48
      $region47: #{tpu_custom_call.1} parent=5 // pred_region
        %s600 = ssub.s32 %s15, 2
        // Predicated region
        $region49: #{tpu_custom_call.1} parent=47 // pred_check
          %p601 = pneg %p105
        $region50: #{tpu_custom_call.1} parent=47 // pred_check_branch
          %603 = sbr.rel (%p601) target = $region52
        $region51: #{tpu_custom_call.1} parent=47 // pred_region
          %s604 = sand.u32 %s90, 1
          %s605 = scalar_lea.sflag [#allocation7], %s604
          %s606 = sand.u32 %s90, 1
          %s607 = smul.addr %s606, 8
          %s608 = scalar_lea.vmem [#allocation10], %s607
          %609 = dma.done %s605, 128
        $region52: #{tpu_custom_call.1} parent=47 // pred_fallthru
          _
      $region48: #{tpu_custom_call.1} parent=5 // pred_fallthru
        _
    $region6: #{tpu_custom_call.1} parent=1 // loop_footer
      %s19 = sadd.s32 1, %s15
    $region7: #{tpu_custom_call.1} parent=1 // loop_footer_branch
      %14 = sbr.rel target = $region3
    $region8: #{tpu_custom_call.1} parent=1 // loop_exit
      _
    %610 = vsyncpa [#allocation6], 1
    %s611 = scalar_lea.sflag [#allocation6], 1
    %612 = vsyncpa %s611, 1
    %613 = vsyncpa [#allocation9], 1
    %614 = vsyncpa [#allocation7], 1
    %s615 = scalar_lea.sflag [#allocation7], 1
    %616 = vsyncpa %s615, 1

</llo_original>
